<compile_context>
chip_gen: v6e
topology: v6e:2x2x1
jax: 0.10.0
libtpu: 0.0.40
codegen_flags: <defaults>
</compile_context>

<pallas_src>
import numpy as np
import jax
import jax.numpy as jnp
from jax.experimental import pallas as pl
from jax.experimental.pallas import tpu as pltpu

BN_EPS = 1e-5
LANE = 128
SUBLANE = 8


def _rup(x, m):
    return ((x + m - 1) // m) * m


def _pick_ib(B):
    """Instances per grid step: largest divisor of B (<=4) that still leaves
    >=2 grid steps for megacore sharding."""
    for d in (4, 2):
        if B % d == 0 and B // d >= 2:
            return d
    return 1


def encoder_kernel(xin_ref, wcomb_ref, g1_ref, b1_ref, w1_ref, gcnb_ref,
                   g2_ref, b2_ref, adj_ref, pool_ref, out_ref):
    ib, n, _ = xin_ref.shape      # instances per step, nodes per instance
    g = pool_ref.shape[1]         # graphs per instance
    inv_n = 1.0 / n
    inv_g = 1.0 / g

    # Hoist shared parameters (loaded once per grid step).
    w_comb = wcomb_ref[...]
    w1 = w1_ref[...]
    g1 = g1_ref[...]
    b1 = b1_ref[...]
    g2 = g2_ref[...]
    b2 = b2_ref[...]
    gcnb = gcnb_ref[...]

    # Static unrolled loop over the IB instances in this block (IB <= 4).
    for i in range(ib):
        # --- fused (mlp_con | mlp_var | biases) + tanh: one MXU matmul ------
        x = jnp.tanh(jnp.dot(xin_ref[i], w_comb,
                             preferred_element_type=jnp.float32))

        # --- BatchNorm1d (bn1): single-pass stats, fused scale/shift --------
        mu = jnp.sum(x, axis=0, keepdims=True) * inv_n
        ex2 = jnp.sum(x * x, axis=0, keepdims=True) * inv_n
        var = ex2 - mu * mu
        scale = g1 * jax.lax.rsqrt(var + BN_EPS)
        x = x * scale + (b1 - mu * scale)
        # TODO(synk): nn.Dropout(p=0.5) is stochastic (training mode); identity
        # here (eval semantics).  Would need pltpu.prng_seed + prng_random_bits.

        # --- GCNConv(low_hid -> scenario): A_norm @ (X @ W^T) + b -----------
        # (bias added after propagation, matching PyG GCNConv)
        xw = jnp.dot(x, w1, preferred_element_type=jnp.float32)
        x = jnp.dot(adj_ref[i], xw, preferred_element_type=jnp.float32) + gcnb

        # --- BatchNorm1d (bn2) + tanh ----------------------------------------
        mu2 = jnp.sum(x, axis=0, keepdims=True) * inv_n
        ex22 = jnp.sum(x * x, axis=0, keepdims=True) * inv_n
        var2 = ex22 - mu2 * mu2
        scale2 = g2 * jax.lax.rsqrt(var2 + BN_EPS)
        x = jnp.tanh(x * scale2 + (b2 - mu2 * scale2))
        # TODO(synk): second dropout is also identity (eval semantics).

        # --- global_mean_pool + tanh; last slab row = mean over graphs -------
        feat = jnp.tanh(jnp.dot(pool_ref[i], x,
                                preferred_element_type=jnp.float32))
        mean = jnp.sum(feat, axis=0, keepdims=True) * inv_g

        # single lane-dense store of the whole [G+1, 128] slab for instance i
        out_ref[i] = jnp.concatenate([feat, mean], axis=0)


def encoder_nohigh_forward(x_var, x_con, wv, bv, wc, bc, g1, b1, w1, gcnb,
                           g2, b2, adj_norm, pool_mat):
    """Batched Encoder_Nohigh.forward.

    Per-instance inputs (leading dim B = independent graph batches):
      x_var [B, Nv, var_dim], x_con [B, Nc, 1],
      adj_norm [B, N, N] (GCN-normalized dense adjacency, N = Nc + Nv,
      con nodes first), pool_mat [B, G, N] (global_mean_pool matrix).
    Shared parameters:
      wv [var_dim, low_hid] = mlp_var.weight.T, bv [low_hid],
      wc [1, low_hid]       = mlp_con.weight.T, bc [low_hid],
      w1 [low_hid, scen]    = conv1.lin.weight.T, gcnb [scen],
      g1/b1 [low_hid], g2/b2 [scen] BatchNorm affine params.
    Returns feat [B, G, scen], feat_mean [B, scen].
    """
    f32 = jnp.float32
    B, Nv, var_dim = x_var.shape
    Nc = x_con.shape[1]
    N = Nc + Nv
    low_hid = wv.shape[1]
    scen = w1.shape[1]
    G = pool_mat.shape[1]

    # con value | var feats | con-bias flag | var-bias flag  -> pad to sublane
    K = var_dim + 3
    Kp = _rup(K, SUBLANE)
    Hp = _rup(low_hid, LANE)
    Sp = _rup(scen, LANE)

    # --- host-side fold of (mlp_con, mlp_var, biases) into one matmul -------
    x_in = jnp.zeros((B, N, Kp), f32)
    x_in = x_in.at[:, :Nc, 0:1].set(x_con.astype(f32))            # con value
    x_in = x_in.at[:, Nc:, 1:1 + var_dim].set(x_var.astype(f32))  # var feats
    x_in = x_in.at[:, :Nc, 1 + var_dim].set(1.0)                  # con bias flag
    x_in = x_in.at[:, Nc:, 2 + var_dim].set(1.0)                  # var bias flag

    w_comb = jnp.zeros((Kp, Hp), f32)
    w_comb = w_comb.at[0:1, :low_hid].set(wc.astype(f32))
    w_comb = w_comb.at[1:1 + var_dim, :low_hid].set(wv.astype(f32))
    w_comb = w_comb.at[1 + var_dim, :low_hid].set(jnp.asarray(bc, f32).reshape(-1))
    w_comb = w_comb.at[2 + var_dim, :low_hid].set(jnp.asarray(bv, f32).reshape(-1))

    def pad_row(v, width):
        v = jnp.asarray(v, f32).reshape(1, -1)
        return jnp.pad(v, ((0, 0), (0, width - v.shape[1])))

    g1p, b1p = pad_row(g1, Hp), pad_row(b1, Hp)
    g2p, b2p = pad_row(g2, Sp), pad_row(b2, Sp)
    gcnbp = pad_row(gcnb, Sp)

    w1p = jnp.zeros((Hp, Sp), f32)
    w1p = w1p.at[:low_hid, :scen].set(w1.astype(f32))

    adjp = adj_norm.astype(f32)
    poolp = pool_mat.astype(f32)

    IB = _pick_ib(B)
    inst = lambda b: (b, 0, 0)        # per-instance 3-D arrays
    shared = lambda b: (0, 0)         # shared 2-D parameters (never re-DMA'd)

    out = pl.pallas_call(
        encoder_kernel,
        grid=(B // IB,),
        in_specs=[
            pl.BlockSpec((IB, N, Kp), inst),    # x_in
            pl.BlockSpec((Kp, Hp), shared),     # combined MLP weight+bias
            pl.BlockSpec((1, Hp), shared),      # bn1 gamma
            pl.BlockSpec((1, Hp), shared),      # bn1 beta
            pl.BlockSpec((Hp, Sp), shared),     # gcn weight
            pl.BlockSpec((1, Sp), shared),      # gcn bias
            pl.BlockSpec((1, Sp), shared),      # bn2 gamma
            pl.BlockSpec((1, Sp), shared),      # bn2 beta
            pl.BlockSpec((IB, N, N), inst),     # normalized adjacency
            pl.BlockSpec((IB, G, N), inst),     # mean-pool matrix
        ],
        out_specs=pl.BlockSpec((IB, G + 1, Sp), inst),
        out_shape=jax.ShapeDtypeStruct((B, G + 1, Sp), f32),
        compiler_params=pltpu.CompilerParams(
            dimension_semantics=("parallel",)),
    )(x_in, w_comb, g1p, b1p, w1p, gcnbp, g2p, b2p, adjp, poolp)

    feat = out[:, :G, :scen]
    feat_mean = out[:, G, :scen]
    return feat, feat_mean


def orthogonal_init(key, shape):
    """Deterministic orthogonal-ish init (QR of a gaussian); matches shapes of
    nn.init.orthogonal_."""
    rows, cols = shape
    n = max(rows, cols)
    a = jax.random.normal(key, (n, n), jnp.float32)
    q, r = jnp.linalg.qr(a)
    q = q * jnp.sign(jnp.diagonal(r))[None, :]
    return q[:rows, :cols].astype(jnp.float32)


if __name__ == "__main__":
    # --- sizes (small, consistent with the module) ---------------------------
    var_dim, con_dim = 4, 1
    low_hid_dim, scenario_dim = 32, 16
    high_hid_dim, high_out_dim = 16, 8      # defined in __init__, unused in forward
    Nc, Nv = 8, 16                          # con nodes first, then var nodes
    N = Nc + Nv
    G = 2                                   # graphs per instance
    B = 4                                   # independent instances per pallas_call

    key = jax.random.PRNGKey(0)
    ks = jax.random.split(key, 12)

    # graph.x : [B, N, var_dim]; con nodes occupy rows [0, Nc), var nodes [Nc, N)
    x_all = jax.random.normal(ks[0], (B, N, var_dim), jnp.float32)
    x_con = x_all[:, :Nc, 0:1]              # graph.x[mask_con][:, 0:1]
    x_var = x_all[:, Nc:, :]                # graph.x[mask_var]

    # --- parameters (deterministic; nonzero biases / BN affine to exercise all
    #     folded paths — forward() must be correct for arbitrary weights) ------
    W_var = orthogonal_init(ks[1], (low_hid_dim, var_dim))        # nn.Linear weight
    W_con = orthogonal_init(ks[2], (low_hid_dim, con_dim))
    W_gcn1 = orthogonal_init(ks[3], (scenario_dim, low_hid_dim))  # conv1.lin.weight
    wv = jnp.asarray(W_var.T)                                     # [var_dim, low_hid]
    wc = jnp.asarray(W_con.T)                                     # [1, low_hid]
    w1 = jnp.asarray(W_gcn1.T)                                    # [low_hid, scenario]
    bv = 0.05 * jax.random.normal(ks[4], (low_hid_dim,), jnp.float32)
    bc = 0.05 * jax.random.normal(ks[5], (low_hid_dim,), jnp.float32)
    gcn_bias = 0.05 * jax.random.normal(ks[6], (scenario_dim,), jnp.float32)
    g1 = 1.0 + 0.1 * jax.random.normal(ks[7], (low_hid_dim,), jnp.float32)
    b1 = 0.1 * jax.random.normal(ks[8], (low_hid_dim,), jnp.float32)
    g2 = 1.0 + 0.1 * jax.random.normal(ks[9], (scenario_dim,), jnp.float32)
    b2 = 0.1 * jax.random.normal(ks[10], (scenario_dim,), jnp.float32)

    # --- graph structure: batch assignment + bipartite edges -----------------
    batch = np.zeros(N, dtype=np.int32)
    batch[0:4] = 0; batch[4:8] = 1                  # con nodes
    batch[8:16] = 0; batch[16:24] = 1               # var nodes

    A = np.zeros((N, N), dtype=np.float32)
    for c in range(Nc):
        for v in range(Nc, N):
            if batch[c] == batch[v] and (c + v) % 2 == 0:
                w = 0.5 + 0.05 * ((c * 7 + v * 3) % 10)
                A[c, v] = w
                A[v, c] = w                         # symmetric

    # GCN normalization with self loops: D^{-1/2} (A + I) D^{-1/2}
    A_hat = A + np.eye(N, dtype=np.float32)
    deg = A_hat.sum(axis=1)
    dinv = np.where(deg > 0, 1.0 / np.sqrt(deg), 0.0).astype(np.float32)
    A_norm = (dinv[:, None] * A_hat * dinv[None, :]).astype(np.float32)

    # global_mean_pool as a matrix P [G, N]
    P = np.zeros((G, N), dtype=np.float32)
    for gg in range(G):
        idx = (batch == gg)
        P[gg, idx] = 1.0 / idx.sum()

    A_b = jnp.asarray(np.broadcast_to(A_norm, (B, N, N)).copy())
    P_b = jnp.asarray(np.broadcast_to(P, (B, G, N)).copy())

    # --- run ------------------------------------------------------------------
    feat, feat_mean = encoder_nohigh_forward(
        x_var, x_con, wv, bv, wc, bc, g1, b1, w1, gcn_bias, g2, b2, A_b, P_b)
    feat = jax.block_until_ready(feat)
    feat_mean = jax.block_until_ready(feat_mean)

    assert feat.shape == (B, G, scenario_dim)
    assert feat_mean.shape == (B, scenario_dim)
    assert bool(jnp.all(jnp.isfinite(feat))) and bool(jnp.all(jnp.isfinite(feat_mean)))

    # --- pure-numpy float64 reference (module math) for sanity ---------------
    wv64 = np.asarray(wv, np.float64); wc64 = np.asarray(wc, np.float64)
    bv64 = np.asarray(bv, np.float64); bc64 = np.asarray(bc, np.float64)
    w164 = np.asarray(w1, np.float64)
    g164 = np.asarray(g1, np.float64); b164 = np.asarray(b1, np.float64)
    g264 = np.asarray(g2, np.float64); b264 = np.asarray(b2, np.float64)
    gb64 = np.asarray(gcn_bias, np.float64)

    def ref_forward(xv, xc, A, P):
        xv = np.asarray(xv, np.float64); xc = np.asarray(xc, np.float64)
        var_feat = np.tanh(xv @ wv64 + bv64)
        con_feat = np.tanh(xc @ wc64 + bc64)
        x = np.concatenate([con_feat, var_feat], axis=0)
        mu = x.mean(0, keepdims=True)
        var = ((x - mu) ** 2).mean(0, keepdims=True)
        x = (x - mu) / np.sqrt(var + BN_EPS) * g164 + b164
        x = np.asarray(A, np.float64) @ (x @ w164) + gb64
        mu2 = x.mean(0, keepdims=True)
        var2 = ((x - mu2) ** 2).mean(0, keepdims=True)
        x = np.tanh((x - mu2) / np.sqrt(var2 + BN_EPS) * g264 + b264)
        f = np.tanh(np.asarray(P, np.float64) @ x)
        return f, f.mean(0)

    for b in range(B):
        rf, rm = ref_forward(x_var[b], x_con[b], A_norm, P)
        np.testing.assert_allclose(np.asarray(feat[b]), rf, rtol=5e-3, atol=5e-3)
        np.testing.assert_allclose(np.asarray(feat_mean[b]), rm, rtol=5e-3, atol=5e-3)

    print("KERNEL_OK")
</pallas_src>

<mosaic_0001>
module attributes {stable_mosaic.version = 11 : i64} {
  func.func @encoder_kernel(%arg0: i32, %arg1: memref<2x24x8xf32, #tpu.memory_space<vmem>>, %arg2: memref<8x128xf32, #tpu.memory_space<vmem>>, %arg3: memref<1x128xf32, #tpu.memory_space<vmem>>, %arg4: memref<1x128xf32, #tpu.memory_space<vmem>>, %arg5: memref<128x128xf32, #tpu.memory_space<vmem>>, %arg6: memref<1x128xf32, #tpu.memory_space<vmem>>, %arg7: memref<1x128xf32, #tpu.memory_space<vmem>>, %arg8: memref<1x128xf32, #tpu.memory_space<vmem>>, %arg9: memref<2x24x24xf32, #tpu.memory_space<vmem>>, %arg10: memref<2x2x24xf32, #tpu.memory_space<vmem>>, %arg11: memref<2x3x128xf32, #tpu.memory_space<vmem>>) attributes {dimension_semantics = [#tpu.dimension_semantics<parallel>], iteration_bounds = array<i64: 2>, scalar_prefetch = 0 : i64, scratch_operands = 0 : i64, tpu.core_type = #tpu.core_type<tc>, window_params = [{transform_indices = @transform_0, window_bounds = array<i64: 2, 24, 8>}, {pipeline_mode = #tpu.pipeline_mode<synchronous>, transform_indices = @transform_1, window_bounds = array<i64: 8, 128>}, {pipeline_mode = #tpu.pipeline_mode<synchronous>, transform_indices = @transform_2, window_bounds = array<i64: 1, 128>}, {pipeline_mode = #tpu.pipeline_mode<synchronous>, transform_indices = @transform_3, window_bounds = array<i64: 1, 128>}, {pipeline_mode = #tpu.pipeline_mode<synchronous>, transform_indices = @transform_4, window_bounds = array<i64: 128, 128>}, {pipeline_mode = #tpu.pipeline_mode<synchronous>, transform_indices = @transform_5, window_bounds = array<i64: 1, 128>}, {pipeline_mode = #tpu.pipeline_mode<synchronous>, transform_indices = @transform_6, window_bounds = array<i64: 1, 128>}, {pipeline_mode = #tpu.pipeline_mode<synchronous>, transform_indices = @transform_7, window_bounds = array<i64: 1, 128>}, {transform_indices = @transform_8, window_bounds = array<i64: 2, 24, 24>}, {transform_indices = @transform_9, window_bounds = array<i64: 2, 2, 24>}, {transform_indices = @transform_10, window_bounds = array<i64: 2, 3, 128>}]} {
    %c0 = arith.constant 0 : index
    %c0_0 = arith.constant 0 : index
    %0 = vector.load %arg2[%c0, %c0_0] : memref<8x128xf32, #tpu.memory_space<vmem>>, vector<8x128xf32>
    %c0_1 = arith.constant 0 : index
    %c0_2 = arith.constant 0 : index
    %1 = vector.load %arg5[%c0_1, %c0_2] : memref<128x128xf32, #tpu.memory_space<vmem>>, vector<128x128xf32>
    %c0_3 = arith.constant 0 : index
    %c0_4 = arith.constant 0 : index
    %2 = vector.load %arg3[%c0_3, %c0_4] : memref<1x128xf32, #tpu.memory_space<vmem>>, vector<1x128xf32>
    %c0_5 = arith.constant 0 : index
    %c0_6 = arith.constant 0 : index
    %3 = vector.load %arg4[%c0_5, %c0_6] : memref<1x128xf32, #tpu.memory_space<vmem>>, vector<1x128xf32>
    %c0_7 = arith.constant 0 : index
    %c0_8 = arith.constant 0 : index
    %4 = vector.load %arg7[%c0_7, %c0_8] : memref<1x128xf32, #tpu.memory_space<vmem>>, vector<1x128xf32>
    %c0_9 = arith.constant 0 : index
    %c0_10 = arith.constant 0 : index
    %5 = vector.load %arg8[%c0_9, %c0_10] : memref<1x128xf32, #tpu.memory_space<vmem>>, vector<1x128xf32>
    %c0_11 = arith.constant 0 : index
    %c0_12 = arith.constant 0 : index
    %6 = vector.load %arg6[%c0_11, %c0_12] : memref<1x128xf32, #tpu.memory_space<vmem>>, vector<1x128xf32>
    %c0_13 = arith.constant 0 : index
    %c0_14 = arith.constant 0 : index
    %c0_15 = arith.constant 0 : index
    %7 = vector.load %arg1[%c0_13, %c0_14, %c0_15] : memref<2x24x8xf32, #tpu.memory_space<vmem>>, vector<1x24x8xf32>
    %8 = vector.shape_cast %7 : vector<1x24x8xf32> to vector<24x8xf32>
    %cst = arith.constant dense<0.000000e+00> : vector<24x128xf32>
    %9 = tpu.matmul %8, %0, %cst {dimension_numbers = #tpu.dot_dimension_numbers<[1], [0], [0], [1], [0, 0, 1, 1], [], []>} : vector<24x8xf32>, vector<8x128xf32>, vector<24x128xf32> -> vector<24x128xf32>
    %10 = math.tanh %9 : vector<24x128xf32>
    %cst_16 = arith.constant dense<0.000000e+00> : vector<128xf32>
    %11 = vector.multi_reduction <add>, %10, %cst_16 [0] : vector<24x128xf32> to vector<128xf32>
    %12 = vector.shape_cast %11 : vector<128xf32> to vector<1x128xf32>
    %cst_17 = arith.constant 0.0416666679 : f32
    %13 = vector.broadcast %cst_17 : f32 to vector<1x128xf32>
    %14 = arith.mulf %12, %13 : vector<1x128xf32>
    %15 = arith.mulf %10, %10 : vector<24x128xf32>
    %cst_18 = arith.constant dense<0.000000e+00> : vector<128xf32>
    %16 = vector.multi_reduction <add>, %15, %cst_18 [0] : vector<24x128xf32> to vector<128xf32>
    %17 = vector.shape_cast %16 : vector<128xf32> to vector<1x128xf32>
    %cst_19 = arith.constant 0.0416666679 : f32
    %18 = vector.broadcast %cst_19 : f32 to vector<1x128xf32>
    %19 = arith.mulf %17, %18 : vector<1x128xf32>
    %20 = arith.mulf %14, %14 : vector<1x128xf32>
    %21 = arith.subf %19, %20 : vector<1x128xf32>
    %cst_20 = arith.constant 9.99999974E-6 : f32
    %22 = vector.broadcast %cst_20 : f32 to vector<1x128xf32>
    %23 = arith.addf %21, %22 : vector<1x128xf32>
    %24 = math.rsqrt %23 : vector<1x128xf32>
    %25 = arith.mulf %2, %24 : vector<1x128xf32>
    %26 = vector.broadcast %25 : vector<1x128xf32> to vector<24x128xf32>
    %27 = arith.mulf %10, %26 : vector<24x128xf32>
    %28 = arith.mulf %14, %25 : vector<1x128xf32>
    %29 = arith.subf %3, %28 : vector<1x128xf32>
    %30 = vector.broadcast %29 : vector<1x128xf32> to vector<24x128xf32>
    %31 = arith.addf %27, %30 : vector<24x128xf32>
    %cst_21 = arith.constant dense<0.000000e+00> : vector<24x128xf32>
    %32 = tpu.matmul %31, %1, %cst_21 {dimension_numbers = #tpu.dot_dimension_numbers<[1], [0], [0], [1], [0, 0, 1, 1], [], []>} : vector<24x128xf32>, vector<128x128xf32>, vector<24x128xf32> -> vector<24x128xf32>
    %c0_22 = arith.constant 0 : index
    %c0_23 = arith.constant 0 : index
    %c0_24 = arith.constant 0 : index
    %33 = vector.load %arg9[%c0_22, %c0_23, %c0_24] : memref<2x24x24xf32, #tpu.memory_space<vmem>>, vector<1x24x24xf32>
    %34 = vector.shape_cast %33 : vector<1x24x24xf32> to vector<24x24xf32>
    %cst_25 = arith.constant dense<0.000000e+00> : vector<24x128xf32>
    %35 = tpu.matmul %34, %32, %cst_25 {dimension_numbers = #tpu.dot_dimension_numbers<[1], [0], [0], [1], [0, 0, 1, 1], [], []>} : vector<24x24xf32>, vector<24x128xf32>, vector<24x128xf32> -> vector<24x128xf32>
    %36 = vector.broadcast %6 : vector<1x128xf32> to vector<24x128xf32>
    %37 = arith.addf %35, %36 : vector<24x128xf32>
    %cst_26 = arith.constant dense<0.000000e+00> : vector<128xf32>
    %38 = vector.multi_reduction <add>, %37, %cst_26 [0] : vector<24x128xf32> to vector<128xf32>
    %39 = vector.shape_cast %38 : vector<128xf32> to vector<1x128xf32>
    %cst_27 = arith.constant 0.0416666679 : f32
    %40 = vector.broadcast %cst_27 : f32 to vector<1x128xf32>
    %41 = arith.mulf %39, %40 : vector<1x128xf32>
    %42 = arith.mulf %37, %37 : vector<24x128xf32>
    %cst_28 = arith.constant dense<0.000000e+00> : vector<128xf32>
    %43 = vector.multi_reduction <add>, %42, %cst_28 [0] : vector<24x128xf32> to vector<128xf32>
    %44 = vector.shape_cast %43 : vector<128xf32> to vector<1x128xf32>
    %cst_29 = arith.constant 0.0416666679 : f32
    %45 = vector.broadcast %cst_29 : f32 to vector<1x128xf32>
    %46 = arith.mulf %44, %45 : vector<1x128xf32>
    %47 = arith.mulf %41, %41 : vector<1x128xf32>
    %48 = arith.subf %46, %47 : vector<1x128xf32>
    %cst_30 = arith.constant 9.99999974E-6 : f32
    %49 = vector.broadcast %cst_30 : f32 to vector<1x128xf32>
    %50 = arith.addf %48, %49 : vector<1x128xf32>
    %51 = math.rsqrt %50 : vector<1x128xf32>
    %52 = arith.mulf %4, %51 : vector<1x128xf32>
    %53 = vector.broadcast %52 : vector<1x128xf32> to vector<24x128xf32>
    %54 = arith.mulf %37, %53 : vector<24x128xf32>
    %55 = arith.mulf %41, %52 : vector<1x128xf32>
    %56 = arith.subf %5, %55 : vector<1x128xf32>
    %57 = vector.broadcast %56 : vector<1x128xf32> to vector<24x128xf32>
    %58 = arith.addf %54, %57 : vector<24x128xf32>
    %59 = math.tanh %58 : vector<24x128xf32>
    %c0_31 = arith.constant 0 : index
    %c0_32 = arith.constant 0 : index
    %c0_33 = arith.constant 0 : index
    %60 = vector.load %arg10[%c0_31, %c0_32, %c0_33] : memref<2x2x24xf32, #tpu.memory_space<vmem>>, vector<1x2x24xf32>
    %61 = vector.shape_cast %60 : vector<1x2x24xf32> to vector<2x24xf32>
    %cst_34 = arith.constant dense<0.000000e+00> : vector<2x128xf32>
    %62 = tpu.matmul %61, %59, %cst_34 {dimension_numbers = #tpu.dot_dimension_numbers<[1], [0], [0], [1], [0, 0, 1, 1], [], []>} : vector<2x24xf32>, vector<24x128xf32>, vector<2x128xf32> -> vector<2x128xf32>
    %63 = math.tanh %62 : vector<2x128xf32>
    %cst_35 = arith.constant dense<0.000000e+00> : vector<128xf32>
    %64 = vector.multi_reduction <add>, %63, %cst_35 [0] : vector<2x128xf32> to vector<128xf32>
    %65 = vector.shape_cast %64 : vector<128xf32> to vector<1x128xf32>
    %cst_36 = arith.constant 5.000000e-01 : f32
    %66 = vector.broadcast %cst_36 : f32 to vector<1x128xf32>
    %67 = arith.mulf %65, %66 : vector<1x128xf32>
    %68 = tpu.concatenate %63, %67 in 0 : vector<2x128xf32>, vector<1x128xf32> -> vector<3x128xf32>
    %c0_37 = arith.constant 0 : index
    %c0_38 = arith.constant 0 : index
    %c0_39 = arith.constant 0 : index
    %69 = vector.load %arg11[%c0_37, %c0_38, %c0_39] : memref<2x3x128xf32, #tpu.memory_space<vmem>>, vector<1x3x128xf32>
    %70 = vector.shape_cast %69 : vector<1x3x128xf32> to vector<3x128xf32>
    %71 = vector.shape_cast %68 : vector<3x128xf32> to vector<1x3x128xf32>
    tpu.vector_store %arg11[%c0_37, %c0_38, %c0_39], %71 {strides = array<i32>} : memref<2x3x128xf32, #tpu.memory_space<vmem>>, vector<1x3x128xf32>,
    %c1 = arith.constant 1 : index
    %c0_40 = arith.constant 0 : index
    %c0_41 = arith.constant 0 : index
    %72 = vector.load %arg1[%c1, %c0_40, %c0_41] : memref<2x24x8xf32, #tpu.memory_space<vmem>>, vector<1x24x8xf32>
    %73 = vector.shape_cast %72 : vector<1x24x8xf32> to vector<24x8xf32>
    %cst_42 = arith.constant dense<0.000000e+00> : vector<24x128xf32>
    %74 = tpu.matmul %73, %0, %cst_42 {dimension_numbers = #tpu.dot_dimension_numbers<[1], [0], [0], [1], [0, 0, 1, 1], [], []>} : vector<24x8xf32>, vector<8x128xf32>, vector<24x128xf32> -> vector<24x128xf32>
    %75 = math.tanh %74 : vector<24x128xf32>
    %cst_43 = arith.constant dense<0.000000e+00> : vector<128xf32>
    %76 = vector.multi_reduction <add>, %75, %cst_43 [0] : vector<24x128xf32> to vector<128xf32>
    %77 = vector.shape_cast %76 : vector<128xf32> to vector<1x128xf32>
    %cst_44 = arith.constant 0.0416666679 : f32
    %78 = vector.broadcast %cst_44 : f32 to vector<1x128xf32>
    %79 = arith.mulf %77, %78 : vector<1x128xf32>
    %80 = arith.mulf %75, %75 : vector<24x128xf32>
    %cst_45 = arith.constant dense<0.000000e+00> : vector<128xf32>
    %81 = vector.multi_reduction <add>, %80, %cst_45 [0] : vector<24x128xf32> to vector<128xf32>
    %82 = vector.shape_cast %81 : vector<128xf32> to vector<1x128xf32>
    %cst_46 = arith.constant 0.0416666679 : f32
    %83 = vector.broadcast %cst_46 : f32 to vector<1x128xf32>
    %84 = arith.mulf %82, %83 : vector<1x128xf32>
    %85 = arith.mulf %79, %79 : vector<1x128xf32>
    %86 = arith.subf %84, %85 : vector<1x128xf32>
    %cst_47 = arith.constant 9.99999974E-6 : f32
    %87 = vector.broadcast %cst_47 : f32 to vector<1x128xf32>
    %88 = arith.addf %86, %87 : vector<1x128xf32>
    %89 = math.rsqrt %88 : vector<1x128xf32>
    %90 = arith.mulf %2, %89 : vector<1x128xf32>
    %91 = vector.broadcast %90 : vector<1x128xf32> to vector<24x128xf32>
    %92 = arith.mulf %75, %91 : vector<24x128xf32>
    %93 = arith.mulf %79, %90 : vector<1x128xf32>
    %94 = arith.subf %3, %93 : vector<1x128xf32>
    %95 = vector.broadcast %94 : vector<1x128xf32> to vector<24x128xf32>
    %96 = arith.addf %92, %95 : vector<24x128xf32>
    %cst_48 = arith.constant dense<0.000000e+00> : vector<24x128xf32>
    %97 = tpu.matmul %96, %1, %cst_48 {dimension_numbers = #tpu.dot_dimension_numbers<[1], [0], [0], [1], [0, 0, 1, 1], [], []>} : vector<24x128xf32>, vector<128x128xf32>, vector<24x128xf32> -> vector<24x128xf32>
    %c1_49 = arith.constant 1 : index
    %c0_50 = arith.constant 0 : index
    %c0_51 = arith.constant 0 : index
    %98 = vector.load %arg9[%c1_49, %c0_50, %c0_51] : memref<2x24x24xf32, #tpu.memory_space<vmem>>, vector<1x24x24xf32>
    %99 = vector.shape_cast %98 : vector<1x24x24xf32> to vector<24x24xf32>
    %cst_52 = arith.constant dense<0.000000e+00> : vector<24x128xf32>
    %100 = tpu.matmul %99, %97, %cst_52 {dimension_numbers = #tpu.dot_dimension_numbers<[1], [0], [0], [1], [0, 0, 1, 1], [], []>} : vector<24x24xf32>, vector<24x128xf32>, vector<24x128xf32> -> vector<24x128xf32>
    %101 = vector.broadcast %6 : vector<1x128xf32> to vector<24x128xf32>
    %102 = arith.addf %100, %101 : vector<24x128xf32>
    %cst_53 = arith.constant dense<0.000000e+00> : vector<128xf32>
    %103 = vector.multi_reduction <add>, %102, %cst_53 [0] : vector<24x128xf32> to vector<128xf32>
    %104 = vector.shape_cast %103 : vector<128xf32> to vector<1x128xf32>
    %cst_54 = arith.constant 0.0416666679 : f32
    %105 = vector.broadcast %cst_54 : f32 to vector<1x128xf32>
    %106 = arith.mulf %104, %105 : vector<1x128xf32>
    %107 = arith.mulf %102, %102 : vector<24x128xf32>
    %cst_55 = arith.constant dense<0.000000e+00> : vector<128xf32>
    %108 = vector.multi_reduction <add>, %107, %cst_55 [0] : vector<24x128xf32> to vector<128xf32>
    %109 = vector.shape_cast %108 : vector<128xf32> to vector<1x128xf32>
    %cst_56 = arith.constant 0.0416666679 : f32
    %110 = vector.broadcast %cst_56 : f32 to vector<1x128xf32>
    %111 = arith.mulf %109, %110 : vector<1x128xf32>
    %112 = arith.mulf %106, %106 : vector<1x128xf32>
    %113 = arith.subf %111, %112 : vector<1x128xf32>
    %cst_57 = arith.constant 9.99999974E-6 : f32
    %114 = vector.broadcast %cst_57 : f32 to vector<1x128xf32>
    %115 = arith.addf %113, %114 : vector<1x128xf32>
    %116 = math.rsqrt %115 : vector<1x128xf32>
    %117 = arith.mulf %4, %116 : vector<1x128xf32>
    %118 = vector.broadcast %117 : vector<1x128xf32> to vector<24x128xf32>
    %119 = arith.mulf %102, %118 : vector<24x128xf32>
    %120 = arith.mulf %106, %117 : vector<1x128xf32>
    %121 = arith.subf %5, %120 : vector<1x128xf32>
    %122 = vector.broadcast %121 : vector<1x128xf32> to vector<24x128xf32>
    %123 = arith.addf %119, %122 : vector<24x128xf32>
    %124 = math.tanh %123 : vector<24x128xf32>
    %c1_58 = arith.constant 1 : index
    %c0_59 = arith.constant 0 : index
    %c0_60 = arith.constant 0 : index
    %125 = vector.load %arg10[%c1_58, %c0_59, %c0_60] : memref<2x2x24xf32, #tpu.memory_space<vmem>>, vector<1x2x24xf32>
    %126 = vector.shape_cast %125 : vector<1x2x24xf32> to vector<2x24xf32>
    %cst_61 = arith.constant dense<0.000000e+00> : vector<2x128xf32>
    %127 = tpu.matmul %126, %124, %cst_61 {dimension_numbers = #tpu.dot_dimension_numbers<[1], [0], [0], [1], [0, 0, 1, 1], [], []>} : vector<2x24xf32>, vector<24x128xf32>, vector<2x128xf32> -> vector<2x128xf32>
    %128 = math.tanh %127 : vector<2x128xf32>
    %cst_62 = arith.constant dense<0.000000e+00> : vector<128xf32>
    %129 = vector.multi_reduction <add>, %128, %cst_62 [0] : vector<2x128xf32> to vector<128xf32>
    %130 = vector.shape_cast %129 : vector<128xf32> to vector<1x128xf32>
    %cst_63 = arith.constant 5.000000e-01 : f32
    %131 = vector.broadcast %cst_63 : f32 to vector<1x128xf32>
    %132 = arith.mulf %130, %131 : vector<1x128xf32>
    %133 = tpu.concatenate %128, %132 in 0 : vector<2x128xf32>, vector<1x128xf32> -> vector<3x128xf32>
    %c1_64 = arith.constant 1 : index
    %c0_65 = arith.constant 0 : index
    %c0_66 = arith.constant 0 : index
    %134 = vector.load %arg11[%c1_64, %c0_65, %c0_66] : memref<2x3x128xf32, #tpu.memory_space<vmem>>, vector<1x3x128xf32>
    %135 = vector.shape_cast %134 : vector<1x3x128xf32> to vector<3x128xf32>
    %136 = vector.shape_cast %133 : vector<3x128xf32> to vector<1x3x128xf32>
    tpu.vector_store %arg11[%c1_64, %c0_65, %c0_66], %136 {strides = array<i32>} : memref<2x3x128xf32, #tpu.memory_space<vmem>>, vector<1x3x128xf32>,
    return
  }
  func.func @transform_0(%arg0: i32) -> (i32, i32, i32) {
    %c0_i32 = arith.constant 0 : i32
    %c0_i32_0 = arith.constant 0 : i32
    %c0_i32_1 = arith.constant 0 : i32
    return %arg0, %c0_i32, %c0_i32_0 : i32, i32, i32
  }
  func.func @transform_1(%arg0: i32) -> (i32, i32) {
    %c0_i32 = arith.constant 0 : i32
    %c0_i32_0 = arith.constant 0 : i32
    %c0_i32_1 = arith.constant 0 : i32
    return %c0_i32, %c0_i32_0 : i32, i32
  }
  func.func @transform_2(%arg0: i32) -> (i32, i32) {
    %c0_i32 = arith.constant 0 : i32
    %c0_i32_0 = arith.constant 0 : i32
    %c0_i32_1 = arith.constant 0 : i32
    return %c0_i32, %c0_i32_0 : i32, i32
  }
  func.func @transform_3(%arg0: i32) -> (i32, i32) {
    %c0_i32 = arith.constant 0 : i32
    %c0_i32_0 = arith.constant 0 : i32
    %c0_i32_1 = arith.constant 0 : i32
    return %c0_i32, %c0_i32_0 : i32, i32
  }
  func.func @transform_4(%arg0: i32) -> (i32, i32) {
    %c0_i32 = arith.constant 0 : i32
    %c0_i32_0 = arith.constant 0 : i32
    %c0_i32_1 = arith.constant 0 : i32
    return %c0_i32, %c0_i32_0 : i32, i32
  }
  func.func @transform_5(%arg0: i32) -> (i32, i32) {
    %c0_i32 = arith.constant 0 : i32
    %c0_i32_0 = arith.constant 0 : i32
    %c0_i32_1 = arith.constant 0 : i32
    return %c0_i32, %c0_i32_0 : i32, i32
  }
  func.func @transform_6(%arg0: i32) -> (i32, i32) {
    %c0_i32 = arith.constant 0 : i32
    %c0_i32_0 = arith.constant 0 : i32
    %c0_i32_1 = arith.constant 0 : i32
    return %c0_i32, %c0_i32_0 : i32, i32
  }
  func.func @transform_7(%arg0: i32) -> (i32, i32) {
    %c0_i32 = arith.constant 0 : i32
    %c0_i32_0 = arith.constant 0 : i32
    %c0_i32_1 = arith.constant 0 : i32
    return %c0_i32, %c0_i32_0 : i32, i32
  }
  func.func @transform_8(%arg0: i32) -> (i32, i32, i32) {
    %c0_i32 = arith.constant 0 : i32
    %c0_i32_0 = arith.constant 0 : i32
    %c0_i32_1 = arith.constant 0 : i32
    return %arg0, %c0_i32, %c0_i32_0 : i32, i32, i32
  }
  func.func @transform_9(%arg0: i32) -> (i32, i32, i32) {
    %c0_i32 = arith.constant 0 : i32
    %c0_i32_0 = arith.constant 0 : i32
    %c0_i32_1 = arith.constant 0 : i32
    return %arg0, %c0_i32, %c0_i32_0 : i32, i32, i32
  }
  func.func @transform_10(%arg0: i32) -> (i32, i32, i32) {
    %c0_i32 = arith.constant 0 : i32
    %c0_i32_0 = arith.constant 0 : i32
    %c0_i32_1 = arith.constant 0 : i32
    return %arg0, %c0_i32, %c0_i32_0 : i32, i32, i32
  }
}

</mosaic_0001>

<llo_original>
// kernel: tpu_custom_call.1
$region0: #{tpu_custom_call.1}
  #allocation0 [shape = 'u32[]', space=smem, size = 0x4, offset = 0x4, fixed_abs, tag = 'smem constant byte address 0x4 - core index']
  #allocation1 [shape = 'u32[144,128]{1,0:T(1,128)}', space=vmem, size = 0x12000, scoped, tag = 'internal scratch']
  %s0 = inlined_call_operand.vmem [shape: f32[4,24,8], index: 0, kind: input, shape index: {}]
  %s1 = inlined_call_operand.hbm [shape: f32[8,128], index: 1, kind: input, shape index: {}]
  %s2 = inlined_call_operand.vmem [shape: f32[1,128], index: 2, kind: input, shape index: {}]
  %s3 = inlined_call_operand.hbm [shape: f32[1,128], index: 3, kind: input, shape index: {}]
  %s4 = inlined_call_operand.vmem [shape: f32[128,128], index: 4, kind: input, shape index: {}]
  %s5 = inlined_call_operand.hbm [shape: f32[1,128], index: 5, kind: input, shape index: {}]
  %s6 = inlined_call_operand.vmem [shape: f32[1,128], index: 6, kind: input, shape index: {}]
  %s7 = inlined_call_operand.vmem [shape: f32[1,128], index: 7, kind: input, shape index: {}]
  %s8 = inlined_call_operand.hbm [shape: f32[4,24,24], index: 8, kind: input, shape index: {}]
  %s9 = inlined_call_operand.vmem [shape: f32[4,2,24], index: 9, kind: input, shape index: {}]
  %s10 = inlined_call_operand.vmem [shape: f32[4,3,128], index: 10, kind: output, shape index: {}]
  %s11 = sld [smem:[#allocation0]]
  $region89: #{tpu_custom_call.1} parent=0
    _
  %s13 = ssub.s32 1, %s11
  %s14 = scalar_select 0, %s13, %s11
  $region1: #{tpu_custom_call.1} parent=0
    #allocation2 [shape = 'u8[4096]{0}', space=vmem, size = 0x1000, scoped, tag = 'input window, operand 1, single buffered']
    #allocation3 [shape = 's32[2]{0}', space=sflag, size = 0x8, scoped, tag = 'scoped memory for tpu_custom_call.1']
    #allocation4 [shape = 'u8[512]{0}', space=vmem, size = 0x400, scoped, tag = 'input window, operand 3, single buffered']
    #allocation5 [shape = 's32[1]{0}', space=sflag, size = 0x4, scoped, tag = 'scoped memory for tpu_custom_call.1']
    #allocation6 [shape = 'u8[512]{0}', space=vmem, size = 0x400, scoped, tag = 'input window, operand 5, single buffered']
    #allocation7 [shape = 'u8[49152]{0}', space=vmem, size = 0xc000, scoped, tag = 'input window, operand 8']
    #allocation8 [shape = 's32[2]{0}', space=sflag, size = 0x8, scoped, tag = 'scoped memory for tpu_custom_call.1']
    %15 = vsyncpa [#allocation3], 0
    %16 = vsyncpa [#allocation5], 0
    %17 = vsyncpa [#allocation8], 0
    %s18 = scalar_lea.sflag [#allocation8], 1
    %19 = vsyncpa %s18, 0
    loop: start=0, step=1, limit=4
    $region2: #{tpu_custom_call.1} parent=1 // loop_pre_header
      _
    $region3: #{tpu_custom_call.1} parent=1 // loop_header
      %s21 = sphi 0, %s25
      %p22 = scmp.ge.s32.totalorder %s21, 4
      %s31 = sphi 0, %s33
      %s34 = sphi 0, %s31
      %s35 = sphi 0, %s34
      %s51 = sphi 0, %s35
      %s55 = sphi 0, %s55
      %s57 = sphi 0, %s55
      %s58 = sphi 0, %s57
      %s72 = sphi 0, %s58
      %s76 = sphi 0, %s76
      %s78 = sphi 0, %s76
      %s79 = sphi 0, %s78
      %s93 = sphi 0, %s79
      %s97 = sphi 0, %s97
      %s99 = sphi 0, %s97
      %s100 = sphi 0, %s99
      %s114 = sphi 0, %s100
      %s118 = sphi 0, %s118
      %s120 = sphi 0, %s118
      %s121 = sphi 0, %s120
      %s135 = sphi 0, %s121
      %s139 = sphi 0, %s139
      %s141 = sphi 0, %s139
      %s142 = sphi 0, %s141
      %s156 = sphi 0, %s142
      %s160 = sphi 0, %s160
      %s162 = sphi 0, %s160
      %s163 = sphi 0, %s162
      %s177 = sphi 0, %s163
      %s181 = sphi 0, %s181
      %s183 = sphi 0, %s181
      %s184 = sphi 0, %s183
      %s198 = sphi 0, %s184
      %s204 = sphi 0, %s206
      %s207 = sphi 0, %s204
      %s208 = sphi 0, %s207
      %s224 = sphi 0, %s208
      %s230 = sphi 0, %s232
      %s233 = sphi 0, %s230
      %s234 = sphi 0, %s233
      %s250 = sphi 0, %s234
      %s256 = sphi 0, %s258
      %s259 = sphi 0, %s256
      %s260 = sphi 0, %s259
      %s276 = sphi 0, %s260
    $region4: #{tpu_custom_call.1} parent=1 // loop_header_branch
      %24 = sbr.rel (%p22) target = $region8
    $region5: #{tpu_custom_call.1} parent=1 // loop_body
      %s26 = ssub.s32 %s21, 1
      %s27 = ssub.s32 %s21, 2
      %s28 = sadd.s32 %s21, 1
      %s29 = ssub.s32 %s21, %s28
      %p30 = scmp.eq.s32.totalorder %s29, 0
      %s32 = sadd.s32 %s31, 1
      %s33 = scalar_select %p30, %s31, %s32
      %p36 = pneg %p30
      %p37 = scmp.eq.s32.totalorder %s21, 1
      %p38 = por %p36, %p37
      %p39 = scmp.ne.s32.totalorder %s31, %s34
      %p40 = scmp.eq.s32.totalorder %s21, 0
      %p41 = por %p39, %p40
      %p42 = scmp.ne.s32.totalorder %s31, %s34
      %p43 = scmp.eq.s32.totalorder %s26, 1
      %p44 = por %p42, %p43
      %p45 = scmp.ne.s32.totalorder %s34, %s35
      %p46 = scmp.eq.s32.totalorder %s26, 0
      %p47 = por %p45, %p46
      %p48 = scmp.ne.s32.totalorder %s34, %s35
      %p49 = scmp.eq.s32.totalorder %s27, 1
      %p50 = por %p48, %p49
      %p52 = scmp.ne.s32.totalorder %s35, %s51
      %p53 = scmp.eq.s32.totalorder %s27, 0
      %p54 = por %p52, %p53
      %s56 = sadd.s32 %s55, 1
      %p59 = scmp.eq.s32.totalorder %s21, 1
      %p60 = scmp.ne.s32.totalorder %s55, %s57
      %p61 = scmp.eq.s32.totalorder %s21, 0
      %p62 = por %p60, %p61
      %p63 = scmp.ne.s32.totalorder %s55, %s57
      %p64 = scmp.eq.s32.totalorder %s26, 1
      %p65 = por %p63, %p64
      %p66 = scmp.ne.s32.totalorder %s57, %s58
      %p67 = scmp.eq.s32.totalorder %s26, 0
      %p68 = por %p66, %p67
      %p69 = scmp.ne.s32.totalorder %s57, %s58
      %p70 = scmp.eq.s32.totalorder %s27, 1
      %p71 = por %p69, %p70
      %p73 = scmp.ne.s32.totalorder %s58, %s72
      %p74 = scmp.eq.s32.totalorder %s27, 0
      %p75 = por %p73, %p74
      %s77 = sadd.s32 %s76, 1
      %p80 = scmp.eq.s32.totalorder %s21, 1
      %p81 = scmp.ne.s32.totalorder %s76, %s78
      %p82 = scmp.eq.s32.totalorder %s21, 0
      %p83 = por %p81, %p82
      %p84 = scmp.ne.s32.totalorder %s76, %s78
      %p85 = scmp.eq.s32.totalorder %s26, 1
      %p86 = por %p84, %p85
      %p87 = scmp.ne.s32.totalorder %s78, %s79
      %p88 = scmp.eq.s32.totalorder %s26, 0
      %p89 = por %p87, %p88
      %p90 = scmp.ne.s32.totalorder %s78, %s79
      %p91 = scmp.eq.s32.totalorder %s27, 1
      %p92 = por %p90, %p91
      %p94 = scmp.ne.s32.totalorder %s79, %s93
      %p95 = scmp.eq.s32.totalorder %s27, 0
      %p96 = por %p94, %p95
      %s98 = sadd.s32 %s97, 1
      %p101 = scmp.eq.s32.totalorder %s21, 1
      %p102 = scmp.ne.s32.totalorder %s97, %s99
      %p103 = scmp.eq.s32.totalorder %s21, 0
      %p104 = por %p102, %p103
      %p105 = scmp.ne.s32.totalorder %s97, %s99
      %p106 = scmp.eq.s32.totalorder %s26, 1
      %p107 = por %p105, %p106
      %p108 = scmp.ne.s32.totalorder %s99, %s100
      %p109 = scmp.eq.s32.totalorder %s26, 0
      %p110 = por %p108, %p109
      %p111 = scmp.ne.s32.totalorder %s99, %s100
      %p112 = scmp.eq.s32.totalorder %s27, 1
      %p113 = por %p111, %p112
      %p115 = scmp.ne.s32.totalorder %s100, %s114
      %p116 = scmp.eq.s32.totalorder %s27, 0
      %p117 = por %p115, %p116
      %s119 = sadd.s32 %s118, 1
      %p122 = scmp.eq.s32.totalorder %s21, 1
      %p123 = scmp.ne.s32.totalorder %s118, %s120
      %p124 = scmp.eq.s32.totalorder %s21, 0
      %p125 = por %p123, %p124
      %p126 = scmp.ne.s32.totalorder %s118, %s120
      %p127 = scmp.eq.s32.totalorder %s26, 1
      %p128 = por %p126, %p127
      %p129 = scmp.ne.s32.totalorder %s120, %s121
      %p130 = scmp.eq.s32.totalorder %s26, 0
      %p131 = por %p129, %p130
      %p132 = scmp.ne.s32.totalorder %s120, %s121
      %p133 = scmp.eq.s32.totalorder %s27, 1
      %p134 = por %p132, %p133
      %p136 = scmp.ne.s32.totalorder %s121, %s135
      %p137 = scmp.eq.s32.totalorder %s27, 0
      %p138 = por %p136, %p137
      %s140 = sadd.s32 %s139, 1
      %p143 = scmp.eq.s32.totalorder %s21, 1
      %p144 = scmp.ne.s32.totalorder %s139, %s141
      %p145 = scmp.eq.s32.totalorder %s21, 0
      %p146 = por %p144, %p145
      %p147 = scmp.ne.s32.totalorder %s139, %s141
      %p148 = scmp.eq.s32.totalorder %s26, 1
      %p149 = por %p147, %p148
      %p150 = scmp.ne.s32.totalorder %s141, %s142
      %p151 = scmp.eq.s32.totalorder %s26, 0
      %p152 = por %p150, %p151
      %p153 = scmp.ne.s32.totalorder %s141, %s142
      %p154 = scmp.eq.s32.totalorder %s27, 1
      %p155 = por %p153, %p154
      %p157 = scmp.ne.s32.totalorder %s142, %s156
      %p158 = scmp.eq.s32.totalorder %s27, 0
      %p159 = por %p157, %p158
      %s161 = sadd.s32 %s160, 1
      %p164 = scmp.eq.s32.totalorder %s21, 1
      %p165 = scmp.ne.s32.totalorder %s160, %s162
      %p166 = scmp.eq.s32.totalorder %s21, 0
      %p167 = por %p165, %p166
      %p168 = scmp.ne.s32.totalorder %s160, %s162
      %p169 = scmp.eq.s32.totalorder %s26, 1
      %p170 = por %p168, %p169
      %p171 = scmp.ne.s32.totalorder %s162, %s163
      %p172 = scmp.eq.s32.totalorder %s26, 0
      %p173 = por %p171, %p172
      %p174 = scmp.ne.s32.totalorder %s162, %s163
      %p175 = scmp.eq.s32.totalorder %s27, 1
      %p176 = por %p174, %p175
      %p178 = scmp.ne.s32.totalorder %s163, %s177
      %p179 = scmp.eq.s32.totalorder %s27, 0
      %p180 = por %p178, %p179
      %s182 = sadd.s32 %s181, 1
      %p185 = scmp.eq.s32.totalorder %s21, 1
      %p186 = scmp.ne.s32.totalorder %s181, %s183
      %p187 = scmp.eq.s32.totalorder %s21, 0
      %p188 = por %p186, %p187
      %p189 = scmp.ne.s32.totalorder %s181, %s183
      %p190 = scmp.eq.s32.totalorder %s26, 1
      %p191 = por %p189, %p190
      %p192 = scmp.ne.s32.totalorder %s183, %s184
      %p193 = scmp.eq.s32.totalorder %s26, 0
      %p194 = por %p192, %p193
      %p195 = scmp.ne.s32.totalorder %s183, %s184
      %p196 = scmp.eq.s32.totalorder %s27, 1
      %p197 = por %p195, %p196
      %p199 = scmp.ne.s32.totalorder %s184, %s198
      %p200 = scmp.eq.s32.totalorder %s27, 0
      %p201 = por %p199, %p200
      %s202 = ssub.s32 %s21, %s28
      %p203 = scmp.eq.s32.totalorder %s202, 0
      %s205 = sadd.s32 %s204, 1
      %s206 = scalar_select %p203, %s204, %s205
      %p209 = pneg %p203
      %p210 = scmp.eq.s32.totalorder %s21, 1
      %p211 = por %p209, %p210
      %p212 = scmp.ne.s32.totalorder %s204, %s207
      %p213 = scmp.eq.s32.totalorder %s21, 0
      %p214 = por %p212, %p213
      %p215 = scmp.ne.s32.totalorder %s204, %s207
      %p216 = scmp.eq.s32.totalorder %s26, 1
      %p217 = por %p215, %p216
      %p218 = scmp.ne.s32.totalorder %s207, %s208
      %p219 = scmp.eq.s32.totalorder %s26, 0
      %p220 = por %p218, %p219
      %p221 = scmp.ne.s32.totalorder %s207, %s208
      %p222 = scmp.eq.s32.totalorder %s27, 1
      %p223 = por %p221, %p222
      %p225 = scmp.ne.s32.totalorder %s208, %s224
      %p226 = scmp.eq.s32.totalorder %s27, 0
      %p227 = por %p225, %p226
      %s228 = ssub.s32 %s21, %s28
      %p229 = scmp.eq.s32.totalorder %s228, 0
      %s231 = sadd.s32 %s230, 1
      %s232 = scalar_select %p229, %s230, %s231
      %p235 = pneg %p229
      %p236 = scmp.eq.s32.totalorder %s21, 1
      %p237 = por %p235, %p236
      %p238 = scmp.ne.s32.totalorder %s230, %s233
      %p239 = scmp.eq.s32.totalorder %s21, 0
      %p240 = por %p238, %p239
      %p241 = scmp.ne.s32.totalorder %s230, %s233
      %p242 = scmp.eq.s32.totalorder %s26, 1
      %p243 = por %p241, %p242
      %p244 = scmp.ne.s32.totalorder %s233, %s234
      %p245 = scmp.eq.s32.totalorder %s26, 0
      %p246 = por %p244, %p245
      %p247 = scmp.ne.s32.totalorder %s233, %s234
      %p248 = scmp.eq.s32.totalorder %s27, 1
      %p249 = por %p247, %p248
      %p251 = scmp.ne.s32.totalorder %s234, %s250
      %p252 = scmp.eq.s32.totalorder %s27, 0
      %p253 = por %p251, %p252
      %s254 = ssub.s32 %s21, %s28
      %p255 = scmp.eq.s32.totalorder %s254, 0
      %s257 = sadd.s32 %s256, 1
      %s258 = scalar_select %p255, %s256, %s257
      %p261 = pneg %p255
      %p262 = scmp.eq.s32.totalorder %s21, 1
      %p263 = por %p261, %p262
      %p264 = scmp.ne.s32.totalorder %s256, %s259
      %p265 = scmp.eq.s32.totalorder %s21, 0
      %p266 = por %p264, %p265
      %p267 = scmp.ne.s32.totalorder %s256, %s259
      %p268 = scmp.eq.s32.totalorder %s26, 1
      %p269 = por %p267, %p268
      %p270 = scmp.ne.s32.totalorder %s259, %s260
      %p271 = scmp.eq.s32.totalorder %s26, 0
      %p272 = por %p270, %p271
      %p273 = scmp.ne.s32.totalorder %s259, %s260
      %p274 = scmp.eq.s32.totalorder %s27, 1
      %p275 = por %p273, %p274
      %p277 = scmp.ne.s32.totalorder %s260, %s276
      %p278 = scmp.eq.s32.totalorder %s27, 0
      %p279 = por %p277, %p278
      %p280 = scmp.le.s32.totalorder 1, %s21
      %p281 = scmp.lt.s32.totalorder %s21, 3
      %p282 = pnand %p280, %p281
      %p283 = pneg %p282
      // Predicated region
      $region9: #{tpu_custom_call.1} parent=5 // pred_check
        _
      $region10: #{tpu_custom_call.1} parent=5 // pred_check_branch
        %285 = sbr.rel (%p282) target = $region12
      $region11: #{tpu_custom_call.1} parent=5 // pred_region
        %s286 = ssub.s32 %s21, 1
        // Predicated region
        $region13: #{tpu_custom_call.1} parent=11 // pred_check
          %p287 = pneg %p68
        $region14: #{tpu_custom_call.1} parent=11 // pred_check_branch
          %289 = sbr.rel (%p287) target = $region16
        $region15: #{tpu_custom_call.1} parent=11 // pred_region
          %s291 = ssub.s32 128, 128
          %292 = vsyncadd [#allocation3], %s291
          %s294 = sshll.u32 [#allocation2], 4
          %s295 = int_to_ptr.vmem [resolvable:$true] %s294
          %297 = dma.hbm_to_vmem [thread:$0]  %s1, 128, %s295, [#allocation3]
        $region16: #{tpu_custom_call.1} parent=11 // pred_fallthru
          _
        // Predicated region
        $region17: #{tpu_custom_call.1} parent=11 // pred_check
          %p298 = pneg %p89
        $region18: #{tpu_custom_call.1} parent=11 // pred_check_branch
          %300 = sbr.rel (%p298) target = $region20
        $region19: #{tpu_custom_call.1} parent=11 // pred_region
          _
        $region20: #{tpu_custom_call.1} parent=11 // pred_fallthru
          _
        // Predicated region
        $region21: #{tpu_custom_call.1} parent=11 // pred_check
          %p301 = pneg %p110
        $region22: #{tpu_custom_call.1} parent=11 // pred_check_branch
          %303 = sbr.rel (%p301) target = $region24
        $region23: #{tpu_custom_call.1} parent=11 // pred_region
          %s305 = ssub.s32 16, 16
          %306 = vsyncadd [#allocation5], %s305
          %s308 = sshll.u32 [#allocation4], 4
          %s309 = int_to_ptr.vmem [resolvable:$true] %s308
          %311 = dma.hbm_to_vmem [thread:$0]  %s3, 16, %s309, [#allocation5]
        $region24: #{tpu_custom_call.1} parent=11 // pred_fallthru
          _
        // Predicated region
        $region25: #{tpu_custom_call.1} parent=11 // pred_check
          %p312 = pneg %p131
        $region26: #{tpu_custom_call.1} parent=11 // pred_check_branch
          %314 = sbr.rel (%p312) target = $region28
        $region27: #{tpu_custom_call.1} parent=11 // pred_region
          _
        $region28: #{tpu_custom_call.1} parent=11 // pred_fallthru
          _
        // Predicated region
        $region29: #{tpu_custom_call.1} parent=11 // pred_check
          %p315 = pneg %p152
        $region30: #{tpu_custom_call.1} parent=11 // pred_check_branch
          %317 = sbr.rel (%p315) target = $region32
        $region31: #{tpu_custom_call.1} parent=11 // pred_region
          %s319 = ssub.s32 16, 16
          %320 = vsyncadd [#allocation5], %s319
          %s322 = sshll.u32 [#allocation6], 4
          %s323 = int_to_ptr.vmem [resolvable:$true] %s322
          %325 = dma.hbm_to_vmem [thread:$0]  %s5, 16, %s323, [#allocation5]
        $region32: #{tpu_custom_call.1} parent=11 // pred_fallthru
          _
        // Predicated region
        $region33: #{tpu_custom_call.1} parent=11 // pred_check
          %p326 = pneg %p173
        $region34: #{tpu_custom_call.1} parent=11 // pred_check_branch
          %328 = sbr.rel (%p326) target = $region36
        $region35: #{tpu_custom_call.1} parent=11 // pred_region
          _
        $region36: #{tpu_custom_call.1} parent=11 // pred_fallthru
          _
        // Predicated region
        $region37: #{tpu_custom_call.1} parent=11 // pred_check
          %p329 = pneg %p194
        $region38: #{tpu_custom_call.1} parent=11 // pred_check_branch
          %331 = sbr.rel (%p329) target = $region40
        $region39: #{tpu_custom_call.1} parent=11 // pred_region
          _
        $region40: #{tpu_custom_call.1} parent=11 // pred_fallthru
          _
      $region12: #{tpu_custom_call.1} parent=5 // pred_fallthru
        _
      %p332 = scmp.lt.s32.totalorder %s21, 2
      // Predicated region
      $region41: #{tpu_custom_call.1} parent=5 // pred_check
        %p333 = pneg %p332
      $region42: #{tpu_custom_call.1} parent=5 // pred_check_branch
        %335 = sbr.rel (%p333) target = $region44
      $region43: #{tpu_custom_call.1} parent=5 // pred_region
        // Predicated region
        $region45: #{tpu_custom_call.1} parent=43 // pred_check
          %p336 = pneg %p41
        $region46: #{tpu_custom_call.1} parent=43 // pred_check_branch
          %338 = sbr.rel (%p336) target = $region48
        $region47: #{tpu_custom_call.1} parent=43 // pred_region
          %s339 = smul.u32 2, %s21
          %p340 = scmp.lt.s32.totalorder %s339, 3
          %s341 = scalar_select %p340, %s339, 3
          %s342 = smul.addr %s341, 3
          %s343 = smul.addr %s342, 8
          %s344 = scalar_lea.vmem %s0, %s343
          %s345 = smul.u32 2, %s21
        $region48: #{tpu_custom_call.1} parent=43 // pred_fallthru
          _
        // Predicated region
        $region49: #{tpu_custom_call.1} parent=43 // pred_check
          %p346 = pneg %p214
        $region50: #{tpu_custom_call.1} parent=43 // pred_check_branch
          %348 = sbr.rel (%p346) target = $region52
        $region51: #{tpu_custom_call.1} parent=43 // pred_region
          %s349 = sand.u32 %s204, 1
          %s350 = scalar_lea.sflag [#allocation8], %s349
          %s351 = sand.u32 %s204, 1
          %s352 = smul.addr %s351, 48
          %s353 = scalar_lea.vmem [#allocation7], %s352
          %s354 = smul.u32 2, %s21
          %s356 = ssub.s32 768, 768
          %357 = vsyncadd %s350, %s356
          %s358 = smul.addr %s354, 3
          %s359 = smul.addr %s358, 128
          %s360 = scalar_lea.hbm %s8, %s359
          %s361 = sshll.u32 %s353, 4
          %s362 = int_to_ptr.vmem [resolvable:$true] %s361
          %367 = dma.hbm_to_vmem [thread:$0]  %s360, 768, %s362, %s350, 128, 128, 8
        $region52: #{tpu_custom_call.1} parent=43 // pred_fallthru
          _
        // Predicated region
        $region53: #{tpu_custom_call.1} parent=43 // pred_check
          %p368 = pneg %p240
        $region54: #{tpu_custom_call.1} parent=43 // pred_check_branch
          %370 = sbr.rel (%p368) target = $region56
        $region55: #{tpu_custom_call.1} parent=43 // pred_region
          %s371 = smul.u32 2, %s21
          %p372 = scmp.lt.s32.totalorder %s371, 3
          %s373 = scalar_select %p372, %s371, 3
          %s374 = smul.addr %s373, 2
          %s375 = scalar_lea.vmem %s9, %s374
          %s376 = smul.u32 2, %s21
        $region56: #{tpu_custom_call.1} parent=43 // pred_fallthru
          _
      $region44: #{tpu_custom_call.1} parent=5 // pred_fallthru
        _
      %p377 = scmp.le.s32.totalorder 1, %s21
      %p378 = scmp.lt.s32.totalorder %s21, 3
      %p379 = pnand %p377, %p378
      %p380 = pneg %p379
      // Predicated region
      $region57: #{tpu_custom_call.1} parent=5 // pred_check
        _
      $region58: #{tpu_custom_call.1} parent=5 // pred_check_branch
        %382 = sbr.rel (%p379) target = $region60
      $region59: #{tpu_custom_call.1} parent=5 // pred_region
        %s383 = ssub.s32 %s21, 1
        // Predicated region
        $region61: #{tpu_custom_call.1} parent=59 // pred_check
          %p384 = pneg %p68
        $region62: #{tpu_custom_call.1} parent=59 // pred_check_branch
          %386 = sbr.rel (%p384) target = $region64
        $region63: #{tpu_custom_call.1} parent=59 // pred_region
          %387 = dma.done [#allocation3], 128
        $region64: #{tpu_custom_call.1} parent=59 // pred_fallthru
          _
        // Predicated region
        $region65: #{tpu_custom_call.1} parent=59 // pred_check
          %p388 = pneg %p110
        $region66: #{tpu_custom_call.1} parent=59 // pred_check_branch
          %390 = sbr.rel (%p388) target = $region68
        $region67: #{tpu_custom_call.1} parent=59 // pred_region
          %391 = dma.done [#allocation5], 16
        $region68: #{tpu_custom_call.1} parent=59 // pred_fallthru
          _
        // Predicated region
        $region69: #{tpu_custom_call.1} parent=59 // pred_check
          %p392 = pneg %p152
        $region70: #{tpu_custom_call.1} parent=59 // pred_check_branch
          %394 = sbr.rel (%p392) target = $region72
        $region71: #{tpu_custom_call.1} parent=59 // pred_region
          %395 = dma.done [#allocation5], 16
        $region72: #{tpu_custom_call.1} parent=59 // pred_fallthru
          _
        %s396 = sand.u32 %s207, 1
        %s397 = scalar_lea.sflag [#allocation8], %s396
        %s398 = sand.u32 %s207, 1
        %s399 = smul.addr %s398, 48
        %s400 = scalar_lea.vmem [#allocation7], %s399
        // Predicated region
        $region73: #{tpu_custom_call.1} parent=59 // pred_check
          %p401 = pneg %p220
        $region74: #{tpu_custom_call.1} parent=59 // pred_check_branch
          %403 = sbr.rel (%p401) target = $region76
        $region75: #{tpu_custom_call.1} parent=59 // pred_region
          %404 = dma.done %s397, 768
        $region76: #{tpu_custom_call.1} parent=59 // pred_fallthru
          _
        %s405 = smul.u32 2, %s26
        %p406 = scmp.lt.s32.totalorder %s405, 3
        %s407 = scalar_select %p406, %s405, 3
        %s408 = smul.addr %s407, 3
        %s409 = smul.addr %s408, 8
        %s410 = scalar_lea.vmem %s0, %s409
        %p411 = pneg %p47
        %p412 = pneg %p44
        %p413 = pneg %p68
        %p414 = pneg %p65
        %p415 = pneg %p89
        %p416 = pneg %p86
        %p417 = pneg %p110
        %p418 = pneg %p107
        %p419 = pneg %p131
        %p420 = pneg %p128
        %p421 = pneg %p152
        %p422 = pneg %p149
        %p423 = pneg %p173
        %p424 = pneg %p170
        %p425 = pneg %p194
        %p426 = pneg %p191
        %s427 = sand.u32 %s207, 1
        %s428 = scalar_lea.sflag [#allocation8], %s427
        %s429 = sand.u32 %s207, 1
        %s430 = smul.addr %s429, 48
        %s431 = scalar_lea.vmem [#allocation7], %s430
        %p432 = pneg %p220
        %p433 = pneg %p217
        %s434 = smul.u32 2, %s26
        %p435 = scmp.lt.s32.totalorder %s434, 3
        %s436 = scalar_select %p435, %s434, 3
        %s437 = smul.addr %s436, 2
        %s438 = scalar_lea.vmem %s9, %s437
        %p439 = pneg %p246
        %p440 = pneg %p243
        %p441 = pneg %p272
        %p442 = pneg %p269
        %s443 = smul.u32 2, %s26
        %p444 = scmp.lt.s32.totalorder %s443, 3
        %s445 = scalar_select %p444, %s443, 3
        %s446 = smul.addr %s445, 4
        %s447 = scalar_lea.vmem %s10, %s446
        %s448 = smul.u32 2, %s26
        %p449 = scmp.lt.s32.totalorder %s448, 3
        %s450 = scalar_select %p449, %s448, 3
        %s451 = smul.addr %s450, 3
        %s452 = smul.addr %s451, 8
        %s453 = scalar_lea.vmem %s0, %s452
        %s454 = smul.u32 2, %s26
        %s455 = smul.u32 2, %s26
        %s456 = smul.u32 2, %s26
        %p457 = scmp.lt.s32.totalorder %s456, 3
        %s458 = scalar_select %p457, %s456, 3
        %s459 = smul.addr %s458, 2
        %s460 = scalar_lea.vmem %s9, %s459
        %s461 = smul.u32 2, %s26
        %s462 = smul.u32 2, %s26
        %p463 = scmp.lt.s32.totalorder %s462, 3
        %s464 = scalar_select %p463, %s462, 3
        %s465 = smul.addr %s464, 4
        %s466 = scalar_lea.vmem %s10, %s465
        %s467 = smul.u32 2, %s26
        %v468 = vld [vmem:[#allocation2] sm:$0xff]
        %v469 = vld [vmem:[%s4] sm:$0xff]
        %v470 = vld [vmem:[%s4 + $0x8] sm:$0xff]
        %v471 = vld [vmem:[%s4 + $0x10] sm:$0xff]
        %v472 = vld [vmem:[%s4 + $0x18] sm:$0xff]
        %v473 = vld [vmem:[%s4 + $0x20] sm:$0xff]
        %v474 = vld [vmem:[%s4 + $0x28] sm:$0xff]
        %v475 = vld [vmem:[%s4 + $0x30] sm:$0xff]
        %v476 = vld [vmem:[%s4 + $0x38] sm:$0xff]
        %v477 = vld [vmem:[%s4 + $0x40] sm:$0xff]
        %v478 = vld [vmem:[%s4 + $0x48] sm:$0xff]
        %v479 = vld [vmem:[%s4 + $0x50] sm:$0xff]
        %v480 = vld [vmem:[%s4 + $0x58] sm:$0xff]
        %v481 = vld [vmem:[%s4 + $0x60] sm:$0xff]
        %v482 = vld [vmem:[%s4 + $0x68] sm:$0xff]
        %v483 = vld [vmem:[%s4 + $0x70] sm:$0xff]
        %v484 = vld [vmem:[%s4 + $0x78] sm:$0xff]
        %v485 = vld [vmem:[%s2] sm:$0x1]
        %v486 = vld [vmem:[#allocation4] sm:$0x1]
        %v487 = vld [vmem:[%s6] sm:$0x1]
        %v488 = vld [vmem:[%s7] sm:$0x1]
        %v489 = vld [vmem:[#allocation6] sm:$0x1]
        %v490 = vld [vmem:[%s453] sm:$0xff]
        %v491 = vld [vmem:[%s453 + $0x8] sm:$0xff]
        %v492 = vld [vmem:[%s453 + $0x10] sm:$0xff]
        %vm493 = vcmask 64512
        %v495 = vsel %vm493, %v490, 0
        %v498 = vsel %vm493, %v491, 0
        %v501 = vsel %vm493, %v492, 0
        %503 = vmatprep.subr.mxu0 0.0
        %504 = vmatpush1.msra.mxu0 0.0
        %505 = vmatprep.subr.mxu0 0.0
        %506 = vmatpush1.msra.mxu0 0.0
        %507 = vmatprep.subr.mxu0 0.0
        %508 = vmatpush1.msra.mxu0 0.0
        %509 = vmatprep.subr.mxu0 0.0
        %510 = vmatpush1.msra.mxu0 0.0
        %511 = vmatprep.subr.mxu0 0.0
        %512 = vmatpush1.msra.mxu0 0.0
        %513 = vmatprep.subr.mxu0 0.0
        %514 = vmatpush1.msra.mxu0 0.0
        %515 = vmatprep.subr.mxu0 0.0
        %516 = vmatpush1.msra.mxu0 0.0
        %517 = vmatprep.subr.mxu0 0.0
        %518 = vmatpush1.msra.mxu0 0.0
        %519 = vmatprep.subr.mxu0 0.0
        %520 = vmatpush1.msra.mxu0 0.0
        %521 = vmatprep.subr.mxu0 0.0
        %522 = vmatpush1.msra.mxu0 0.0
        %523 = vmatprep.subr.mxu0 0.0
        %524 = vmatpush1.msra.mxu0 0.0
        %525 = vmatprep.subr.mxu0 0.0
        %526 = vmatpush1.msra.mxu0 0.0
        %527 = vmatprep.subr.mxu0 0.0
        %528 = vmatpush1.msra.mxu0 0.0
        %529 = vmatprep.subr.mxu0 0.0
        %530 = vmatpush1.msra.mxu0 0.0
        %531 = vmatprep.subr.mxu0 0.0
        %532 = vmatpush1.msra.mxu0 0.0
        %533 = vmatprep.subr.mxu0 0.0
        %534 = vmatpush1.msra.mxu0 %v468
        %535 = vmatprep.subr.mxu0 0.0
        %536 = vmatpush2.msra.mxu0 0.0
        %537 = vmatprep.subr.mxu0 0.0
        %538 = vmatpush2.msra.mxu0 0.0
        %539 = vmatprep.subr.mxu0 0.0
        %540 = vmatpush2.msra.mxu0 0.0
        %541 = vmatprep.subr.mxu0 0.0
        %542 = vmatpush2.msra.mxu0 0.0
        %543 = vmatprep.subr.mxu0 0.0
        %544 = vmatpush2.msra.mxu0 0.0
        %545 = vmatprep.subr.mxu0 0.0
        %546 = vmatpush2.msra.mxu0 0.0
        %547 = vmatprep.subr.mxu0 0.0
        %548 = vmatpush2.msra.mxu0 0.0
        %549 = vmatprep.subr.mxu0 0.0
        %550 = vmatpush2.msra.mxu0 0.0
        %551 = vmatprep.subr.mxu0 0.0
        %552 = vmatpush2.msra.mxu0 0.0
        %553 = vmatprep.subr.mxu0 0.0
        %554 = vmatpush2.msra.mxu0 0.0
        %555 = vmatprep.subr.mxu0 0.0
        %556 = vmatpush2.msra.mxu0 0.0
        %557 = vmatprep.subr.mxu0 0.0
        %558 = vmatpush2.msra.mxu0 0.0
        %559 = vmatprep.subr.mxu0 0.0
        %560 = vmatpush2.msra.mxu0 0.0
        %561 = vmatprep.subr.mxu0 0.0
        %562 = vmatpush2.msra.mxu0 0.0
        %563 = vmatprep.subr.mxu0 0.0
        %564 = vmatpush2.msra.mxu0 0.0
        %565 = vmatprep.subr.mxu0 0.0
        %566 = vmatpush2.msra.mxu0 0.0
        %567 = vmatprep.mubr.f32.mxu0 0.0
        %568 = vmatmul.mubr.f32.gmra.mxu0 %v495
        %v569 = vpop.f32.mrf.mxu0
        %v570 = vadd.f32 0.0, %v569
        %v571 = vpop.f32.mrf.mxu0
        %572 = vmatprep.mubr.f32.mxu0 0.0
        %573 = vmatmul.mubr.f32.gmra.mxu0 %v498
        %v574 = vpop.f32.mrf.mxu0
        %v575 = vadd.f32 0.0, %v574
        %v576 = vpop.f32.mrf.mxu0
        %577 = vmatprep.mubr.f32.mxu0 0.0
        %578 = vmatmul.mubr.f32.gmra.mxu0 %v501
        %v579 = vpop.f32.mrf.mxu0
        %v580 = vadd.f32 0.0, %v579
        %v581 = vpop.f32.mrf.mxu0
        %582 = vdwg.mxu0
        %v583 = vtanh.pop %v570
        %v584 = vtanh.pop %v575
        %v585 = vtanh.pop %v580
        %v586 = vadd.f32 %v583, %v584
        %v587 = vadd.f32 %v586, %v585
        %v588 = vrot.slane %v587, 4
        %v589 = vadd.f32 %v587, %v588
        %v590 = vrot.slane %v589, 2
        %v591 = vadd.f32 %v589, %v590
        %v592 = vrot.slane %v591, 1
        %v593 = vadd.f32 %v591, %v592
        %v594 = vmul.f32 %v593, 0.041666668
        %v595 = vmul.f32 %v583, %v583
        %v596 = vmul.f32 %v584, %v584
        %v597 = vmul.f32 %v585, %v585
        %v598 = vadd.f32 %v595, %v596
        %v599 = vadd.f32 %v598, %v597
        %v600 = vrot.slane %v599, 4
        %v601 = vadd.f32 %v599, %v600
        %v602 = vrot.slane %v601, 2
        %v603 = vadd.f32 %v601, %v602
        %v604 = vrot.slane %v603, 1
        %v605 = vadd.f32 %v603, %v604
        %v606 = vmul.f32 %v605, 0.041666668
        %v607 = vmul.f32 %v594, %v594
        %v608 = vsub.f32 %v606, %v607
        %v609 = vadd.f32 %v608, 1e-05
        %v610 = vrsqrt.pop %v609
        %v611 = vmul.f32 %v485, %v610
        %v613 = vlaneseq
        %v614 = vshrl.u32 %v613, 7
        %v615 = vsub.s32 0, %v614
        %v616 = vrot.slane %v611, %v615
        %v618 = vmul.f32 %v583, %v616
        %v619 = vmul.f32 %v584, %v616
        %v620 = vmul.f32 %v585, %v616
        %v621 = vmul.f32 %v594, %v611
        %v622 = vsub.f32 %v486, %v621
        %v624 = vlaneseq
        %v625 = vshrl.u32 %v624, 7
        %v626 = vsub.s32 0, %v625
        %v627 = vrot.slane %v622, %v626
        %v629 = vadd.f32 %v618, %v627
        %v630 = vadd.f32 %v619, %v627
        %v631 = vadd.f32 %v620, %v627
        %632 = vmatprep.subr.mxu0 0.0
        %633 = vmatpush1.msra.mxu0 %v484
        %634 = vmatprep.subr.mxu0 0.0
        %635 = vmatpush1.msra.mxu0 %v483
        %636 = vmatprep.subr.mxu0 0.0
        %637 = vmatpush1.msra.mxu0 %v482
        %638 = vmatprep.subr.mxu0 0.0
        %639 = vmatpush1.msra.mxu0 %v481
        %640 = vmatprep.subr.mxu0 0.0
        %641 = vmatpush1.msra.mxu0 %v480
        %642 = vmatprep.subr.mxu0 0.0
        %643 = vmatpush1.msra.mxu0 %v479
        %644 = vmatprep.subr.mxu0 0.0
        %645 = vmatpush1.msra.mxu0 %v478
        %646 = vmatprep.subr.mxu0 0.0
        %647 = vmatpush1.msra.mxu0 %v477
        %648 = vmatprep.subr.mxu0 0.0
        %649 = vmatpush1.msra.mxu0 %v476
        %650 = vmatprep.subr.mxu0 0.0
        %651 = vmatpush1.msra.mxu0 %v475
        %652 = vmatprep.subr.mxu0 0.0
        %653 = vmatpush1.msra.mxu0 %v474
        %654 = vmatprep.subr.mxu0 0.0
        %655 = vmatpush1.msra.mxu0 %v473
        %656 = vmatprep.subr.mxu0 0.0
        %657 = vmatpush1.msra.mxu0 %v472
        %658 = vmatprep.subr.mxu0 0.0
        %659 = vmatpush1.msra.mxu0 %v471
        %660 = vmatprep.subr.mxu0 0.0
        %661 = vmatpush1.msra.mxu0 %v470
        %662 = vmatprep.subr.mxu0 0.0
        %663 = vmatpush1.msra.mxu0 %v469
        %664 = vmatprep.subr.mxu0 0.0
        %665 = vmatpush2.msra.mxu0 0.0
        %666 = vmatprep.subr.mxu0 0.0
        %667 = vmatpush2.msra.mxu0 0.0
        %668 = vmatprep.subr.mxu0 0.0
        %669 = vmatpush2.msra.mxu0 0.0
        %670 = vmatprep.subr.mxu0 0.0
        %671 = vmatpush2.msra.mxu0 0.0
        %672 = vmatprep.subr.mxu0 0.0
        %673 = vmatpush2.msra.mxu0 0.0
        %674 = vmatprep.subr.mxu0 0.0
        %675 = vmatpush2.msra.mxu0 0.0
        %676 = vmatprep.subr.mxu0 0.0
        %677 = vmatpush2.msra.mxu0 0.0
        %678 = vmatprep.subr.mxu0 0.0
        %679 = vmatpush2.msra.mxu0 0.0
        %680 = vmatprep.subr.mxu0 0.0
        %681 = vmatpush2.msra.mxu0 0.0
        %682 = vmatprep.subr.mxu0 0.0
        %683 = vmatpush2.msra.mxu0 0.0
        %684 = vmatprep.subr.mxu0 0.0
        %685 = vmatpush2.msra.mxu0 0.0
        %686 = vmatprep.subr.mxu0 0.0
        %687 = vmatpush2.msra.mxu0 0.0
        %688 = vmatprep.subr.mxu0 0.0
        %689 = vmatpush2.msra.mxu0 0.0
        %690 = vmatprep.subr.mxu0 0.0
        %691 = vmatpush2.msra.mxu0 0.0
        %692 = vmatprep.subr.mxu0 0.0
        %693 = vmatpush2.msra.mxu0 0.0
        %694 = vmatprep.subr.mxu0 0.0
        %695 = vmatpush2.msra.mxu0 0.0
        %696 = vmatprep.mubr.f32.mxu0 0.0
        %697 = vmatmul.mubr.f32.gmra.mxu0 %v629
        %v698 = vpop.f32.mrf.mxu0
        %v699 = vadd.f32 0.0, %v698
        %v700 = vpop.f32.mrf.mxu0
        %701 = vmatprep.mubr.f32.mxu0 0.0
        %702 = vmatmul.mubr.f32.gmra.mxu0 %v630
        %v703 = vpop.f32.mrf.mxu0
        %v704 = vadd.f32 0.0, %v703
        %v705 = vpop.f32.mrf.mxu0
        %706 = vmatprep.mubr.f32.mxu0 0.0
        %707 = vmatmul.mubr.f32.gmra.mxu0 %v631
        %v708 = vpop.f32.mrf.mxu0
        %v709 = vadd.f32 0.0, %v708
        %v710 = vpop.f32.mrf.mxu0
        %711 = vdwg.mxu0
        %v712 = vld [vmem:[%s400] sm:$0xff]
        %v713 = vld [vmem:[%s400 + $0x8] sm:$0xff]
        %v714 = vld [vmem:[%s400 + $0x10] sm:$0xff]
        %v716 = vlaneseq
        %v717 = vshrl.u32 %v716, 7
        %v718 = vsub.s32 0, %v717
        %v719 = vrot.slane %v489, %v718
        %vm721 = vcmask 195584
        %v723 = vsel %vm721, %v712, 0
        %v726 = vsel %vm721, %v713, 0
        %v729 = vsel %vm721, %v714, 0
        %731 = vmatprep.subr.mxu0 0.0
        %732 = vmatpush1.msra.mxu0 0.0
        %733 = vmatprep.subr.mxu0 0.0
        %734 = vmatpush1.msra.mxu0 0.0
        %735 = vmatprep.subr.mxu0 0.0
        %736 = vmatpush1.msra.mxu0 0.0
        %737 = vmatprep.subr.mxu0 0.0
        %738 = vmatpush1.msra.mxu0 0.0
        %739 = vmatprep.subr.mxu0 0.0
        %740 = vmatpush1.msra.mxu0 0.0
        %741 = vmatprep.subr.mxu0 0.0
        %742 = vmatpush1.msra.mxu0 0.0
        %743 = vmatprep.subr.mxu0 0.0
        %744 = vmatpush1.msra.mxu0 0.0
        %745 = vmatprep.subr.mxu0 0.0
        %746 = vmatpush1.msra.mxu0 0.0
        %747 = vmatprep.subr.mxu0 0.0
        %748 = vmatpush1.msra.mxu0 0.0
        %749 = vmatprep.subr.mxu0 0.0
        %750 = vmatpush1.msra.mxu0 0.0
        %751 = vmatprep.subr.mxu0 0.0
        %752 = vmatpush1.msra.mxu0 0.0
        %753 = vmatprep.subr.mxu0 0.0
        %754 = vmatpush1.msra.mxu0 0.0
        %755 = vmatprep.subr.mxu0 0.0
        %756 = vmatpush1.msra.mxu0 0.0
        %757 = vmatprep.subr.mxu0 0.0
        %758 = vmatpush1.msra.mxu0 %v709
        %759 = vmatprep.subr.mxu0 0.0
        %760 = vmatpush1.msra.mxu0 %v704
        %761 = vmatprep.subr.mxu0 0.0
        %762 = vmatpush1.msra.mxu0 %v699
        %763 = vmatprep.subr.mxu0 0.0
        %764 = vmatpush2.msra.mxu0 0.0
        %765 = vmatprep.subr.mxu0 0.0
        %766 = vmatpush2.msra.mxu0 0.0
        %767 = vmatprep.subr.mxu0 0.0
        %768 = vmatpush2.msra.mxu0 0.0
        %769 = vmatprep.subr.mxu0 0.0
        %770 = vmatpush2.msra.mxu0 0.0
        %771 = vmatprep.subr.mxu0 0.0
        %772 = vmatpush2.msra.mxu0 0.0
        %773 = vmatprep.subr.mxu0 0.0
        %774 = vmatpush2.msra.mxu0 0.0
        %775 = vmatprep.subr.mxu0 0.0
        %776 = vmatpush2.msra.mxu0 0.0
        %777 = vmatprep.subr.mxu0 0.0
        %778 = vmatpush2.msra.mxu0 0.0
        %779 = vmatprep.subr.mxu0 0.0
        %780 = vmatpush2.msra.mxu0 0.0
        %781 = vmatprep.subr.mxu0 0.0
        %782 = vmatpush2.msra.mxu0 0.0
        %783 = vmatprep.subr.mxu0 0.0
        %784 = vmatpush2.msra.mxu0 0.0
        %785 = vmatprep.subr.mxu0 0.0
        %786 = vmatpush2.msra.mxu0 0.0
        %787 = vmatprep.subr.mxu0 0.0
        %788 = vmatpush2.msra.mxu0 0.0
        %789 = vmatprep.subr.mxu0 0.0
        %790 = vmatpush2.msra.mxu0 0.0
        %791 = vmatprep.subr.mxu0 0.0
        %792 = vmatpush2.msra.mxu0 0.0
        %793 = vmatprep.subr.mxu0 0.0
        %794 = vmatpush2.msra.mxu0 0.0
        %795 = vmatprep.mubr.f32.mxu0 0.0
        %796 = vmatmul.mubr.f32.gmra.mxu0 %v723
        %v797 = vpop.f32.mrf.mxu0
        %v798 = vadd.f32 %v719, %v797
        %v799 = vpop.f32.mrf.mxu0
        %800 = vmatprep.mubr.f32.mxu0 0.0
        %801 = vmatmul.mubr.f32.gmra.mxu0 %v726
        %v802 = vpop.f32.mrf.mxu0
        %v803 = vadd.f32 %v719, %v802
        %v804 = vpop.f32.mrf.mxu0
        %805 = vmatprep.mubr.f32.mxu0 0.0
        %806 = vmatmul.mubr.f32.gmra.mxu0 %v729
        %v807 = vpop.f32.mrf.mxu0
        %v808 = vadd.f32 %v719, %v807
        %v809 = vpop.f32.mrf.mxu0
        %810 = vdwg.mxu0
        %v811 = vadd.f32 %v798, %v803
        %v812 = vadd.f32 %v811, %v808
        %v813 = vrot.slane %v812, 4
        %v814 = vadd.f32 %v812, %v813
        %v815 = vrot.slane %v814, 2
        %v816 = vadd.f32 %v814, %v815
        %v817 = vrot.slane %v816, 1
        %v818 = vadd.f32 %v816, %v817
        %v819 = vmul.f32 %v818, 0.041666668
        %v820 = vmul.f32 %v798, %v798
        %v821 = vmul.f32 %v803, %v803
        %v822 = vmul.f32 %v808, %v808
        %v823 = vadd.f32 %v820, %v821
        %v824 = vadd.f32 %v823, %v822
        %v825 = vrot.slane %v824, 4
        %v826 = vadd.f32 %v824, %v825
        %v827 = vrot.slane %v826, 2
        %v828 = vadd.f32 %v826, %v827
        %v829 = vrot.slane %v828, 1
        %v830 = vadd.f32 %v828, %v829
        %v831 = vmul.f32 %v830, 0.041666668
        %v832 = vmul.f32 %v819, %v819
        %v833 = vsub.f32 %v831, %v832
        %v834 = vadd.f32 %v833, 1e-05
        %v835 = vrsqrt.pop %v834
        %v836 = vmul.f32 %v487, %v835
        %v838 = vlaneseq
        %v839 = vshrl.u32 %v838, 7
        %v840 = vsub.s32 0, %v839
        %v841 = vrot.slane %v836, %v840
        %v843 = vmul.f32 %v798, %v841
        %v844 = vmul.f32 %v803, %v841
        %v845 = vmul.f32 %v808, %v841
        %v846 = vmul.f32 %v819, %v836
        %v847 = vsub.f32 %v488, %v846
        %v849 = vlaneseq
        %v850 = vshrl.u32 %v849, 7
        %v851 = vsub.s32 0, %v850
        %v852 = vrot.slane %v847, %v851
        %v854 = vadd.f32 %v843, %v852
        %v855 = vadd.f32 %v844, %v852
        %v856 = vadd.f32 %v845, %v852
        %v857 = vtanh.pop %v854
        %v858 = vtanh.pop %v855
        %v859 = vtanh.pop %v856
        %v860 = vld [vmem:[%s460] sm:$0x3]
        %v862 = vsel %vm721, %v860, 0
        %864 = vmatprep.subr.mxu0 0.0
        %865 = vmatpush1.msra.mxu0 0.0
        %866 = vmatprep.subr.mxu0 0.0
        %867 = vmatpush1.msra.mxu0 0.0
        %868 = vmatprep.subr.mxu0 0.0
        %869 = vmatpush1.msra.mxu0 0.0
        %870 = vmatprep.subr.mxu0 0.0
        %871 = vmatpush1.msra.mxu0 0.0
        %872 = vmatprep.subr.mxu0 0.0
        %873 = vmatpush1.msra.mxu0 0.0
        %874 = vmatprep.subr.mxu0 0.0
        %875 = vmatpush1.msra.mxu0 0.0
        %876 = vmatprep.subr.mxu0 0.0
        %877 = vmatpush1.msra.mxu0 0.0
        %878 = vmatprep.subr.mxu0 0.0
        %879 = vmatpush1.msra.mxu0 0.0
        %880 = vmatprep.subr.mxu0 0.0
        %881 = vmatpush1.msra.mxu0 0.0
        %882 = vmatprep.subr.mxu0 0.0
        %883 = vmatpush1.msra.mxu0 0.0
        %884 = vmatprep.subr.mxu0 0.0
        %885 = vmatpush1.msra.mxu0 0.0
        %886 = vmatprep.subr.mxu0 0.0
        %887 = vmatpush1.msra.mxu0 0.0
        %888 = vmatprep.subr.mxu0 0.0
        %889 = vmatpush1.msra.mxu0 0.0
        %890 = vmatprep.subr.mxu0 0.0
        %891 = vmatpush1.msra.mxu0 %v859
        %892 = vmatprep.subr.mxu0 0.0
        %893 = vmatpush1.msra.mxu0 %v858
        %894 = vmatprep.subr.mxu0 0.0
        %895 = vmatpush1.msra.mxu0 %v857
        %896 = vmatprep.subr.mxu0 0.0
        %897 = vmatpush2.msra.mxu0 0.0
        %898 = vmatprep.subr.mxu0 0.0
        %899 = vmatpush2.msra.mxu0 0.0
        %900 = vmatprep.subr.mxu0 0.0
        %901 = vmatpush2.msra.mxu0 0.0
        %902 = vmatprep.subr.mxu0 0.0
        %903 = vmatpush2.msra.mxu0 0.0
        %904 = vmatprep.subr.mxu0 0.0
        %905 = vmatpush2.msra.mxu0 0.0
        %906 = vmatprep.subr.mxu0 0.0
        %907 = vmatpush2.msra.mxu0 0.0
        %908 = vmatprep.subr.mxu0 0.0
        %909 = vmatpush2.msra.mxu0 0.0
        %910 = vmatprep.subr.mxu0 0.0
        %911 = vmatpush2.msra.mxu0 0.0
        %912 = vmatprep.subr.mxu0 0.0
        %913 = vmatpush2.msra.mxu0 0.0
        %914 = vmatprep.subr.mxu0 0.0
        %915 = vmatpush2.msra.mxu0 0.0
        %916 = vmatprep.subr.mxu0 0.0
        %917 = vmatpush2.msra.mxu0 0.0
        %918 = vmatprep.subr.mxu0 0.0
        %919 = vmatpush2.msra.mxu0 0.0
        %920 = vmatprep.subr.mxu0 0.0
        %921 = vmatpush2.msra.mxu0 0.0
        %922 = vmatprep.subr.mxu0 0.0
        %923 = vmatpush2.msra.mxu0 0.0
        %924 = vmatprep.subr.mxu0 0.0
        %925 = vmatpush2.msra.mxu0 0.0
        %926 = vmatprep.subr.mxu0 0.0
        %927 = vmatpush2.msra.mxu0 0.0
        %928 = vmatprep.mubr.f32.mxu0 0.0
        %929 = vmatmul.mubr.f32.gmra.mxu0 %v862
        %v930 = vpop.f32.mrf.mxu0
        %v931 = vadd.f32 0.0, %v930
        %v932 = vpop.f32.mrf.mxu0
        %933 = vdwg.mxu0
        %v934 = vtanh.pop %v931
        %vm935 = vcmask 1041408
        %v936 = vsel %vm935, %v934, 0.0
        %v937 = vrot.slane %v936, 4
        %v938 = vadd.f32 %v936, %v937
        %v939 = vrot.slane %v938, 2
        %v940 = vadd.f32 %v938, %v939
        %v941 = vrot.slane %v940, 1
        %v942 = vadd.f32 %v940, %v941
        %v943 = vmul.f32 %v942, 0.5
        %v944 = vsel %vm935, %v934, %v943
        %945 = vst [vmem:[%s466] sm:$0x7] %v944
        %s946 = scalar_lea.vmem %s453, 24
        %v947 = vld [vmem:[%s946] sm:$0xff]
        %v948 = vld [vmem:[%s946 + $0x8] sm:$0xff]
        %v949 = vld [vmem:[%s946 + $0x10] sm:$0xff]
        %v951 = vsel %vm493, %v947, 0
        %v954 = vsel %vm493, %v948, 0
        %v957 = vsel %vm493, %v949, 0
        %959 = vmatprep.subr.mxu0 0.0
        %960 = vmatpush1.msra.mxu0 0.0
        %961 = vmatprep.subr.mxu0 0.0
        %962 = vmatpush1.msra.mxu0 0.0
        %963 = vmatprep.subr.mxu0 0.0
        %964 = vmatpush1.msra.mxu0 0.0
        %965 = vmatprep.subr.mxu0 0.0
        %966 = vmatpush1.msra.mxu0 0.0
        %967 = vmatprep.subr.mxu0 0.0
        %968 = vmatpush1.msra.mxu0 0.0
        %969 = vmatprep.subr.mxu0 0.0
        %970 = vmatpush1.msra.mxu0 0.0
        %971 = vmatprep.subr.mxu0 0.0
        %972 = vmatpush1.msra.mxu0 0.0
        %973 = vmatprep.subr.mxu0 0.0
        %974 = vmatpush1.msra.mxu0 0.0
        %975 = vmatprep.subr.mxu0 0.0
        %976 = vmatpush1.msra.mxu0 0.0
        %977 = vmatprep.subr.mxu0 0.0
        %978 = vmatpush1.msra.mxu0 0.0
        %979 = vmatprep.subr.mxu0 0.0
        %980 = vmatpush1.msra.mxu0 0.0
        %981 = vmatprep.subr.mxu0 0.0
        %982 = vmatpush1.msra.mxu0 0.0
        %983 = vmatprep.subr.mxu0 0.0
        %984 = vmatpush1.msra.mxu0 0.0
        %985 = vmatprep.subr.mxu0 0.0
        %986 = vmatpush1.msra.mxu0 0.0
        %987 = vmatprep.subr.mxu0 0.0
        %988 = vmatpush1.msra.mxu0 0.0
        %989 = vmatprep.subr.mxu0 0.0
        %990 = vmatpush1.msra.mxu0 %v468
        %991 = vmatprep.subr.mxu0 0.0
        %992 = vmatpush2.msra.mxu0 0.0
        %993 = vmatprep.subr.mxu0 0.0
        %994 = vmatpush2.msra.mxu0 0.0
        %995 = vmatprep.subr.mxu0 0.0
        %996 = vmatpush2.msra.mxu0 0.0
        %997 = vmatprep.subr.mxu0 0.0
        %998 = vmatpush2.msra.mxu0 0.0
        %999 = vmatprep.subr.mxu0 0.0
        %1000 = vmatpush2.msra.mxu0 0.0
        %1001 = vmatprep.subr.mxu0 0.0
        %1002 = vmatpush2.msra.mxu0 0.0
        %1003 = vmatprep.subr.mxu0 0.0
        %1004 = vmatpush2.msra.mxu0 0.0
        %1005 = vmatprep.subr.mxu0 0.0
        %1006 = vmatpush2.msra.mxu0 0.0
        %1007 = vmatprep.subr.mxu0 0.0
        %1008 = vmatpush2.msra.mxu0 0.0
        %1009 = vmatprep.subr.mxu0 0.0
        %1010 = vmatpush2.msra.mxu0 0.0
        %1011 = vmatprep.subr.mxu0 0.0
        %1012 = vmatpush2.msra.mxu0 0.0
        %1013 = vmatprep.subr.mxu0 0.0
        %1014 = vmatpush2.msra.mxu0 0.0
        %1015 = vmatprep.subr.mxu0 0.0
        %1016 = vmatpush2.msra.mxu0 0.0
        %1017 = vmatprep.subr.mxu0 0.0
        %1018 = vmatpush2.msra.mxu0 0.0
        %1019 = vmatprep.subr.mxu0 0.0
        %1020 = vmatpush2.msra.mxu0 0.0
        %1021 = vmatprep.subr.mxu0 0.0
        %1022 = vmatpush2.msra.mxu0 0.0
        %1023 = vmatprep.mubr.f32.mxu0 0.0
        %1024 = vmatmul.mubr.f32.gmra.mxu0 %v951
        %v1025 = vpop.f32.mrf.mxu0
        %v1026 = vadd.f32 0.0, %v1025
        %v1027 = vpop.f32.mrf.mxu0
        %1028 = vmatprep.mubr.f32.mxu0 0.0
        %1029 = vmatmul.mubr.f32.gmra.mxu0 %v954
        %v1030 = vpop.f32.mrf.mxu0
        %v1031 = vadd.f32 0.0, %v1030
        %v1032 = vpop.f32.mrf.mxu0
        %1033 = vmatprep.mubr.f32.mxu0 0.0
        %1034 = vmatmul.mubr.f32.gmra.mxu0 %v957
        %v1035 = vpop.f32.mrf.mxu0
        %v1036 = vadd.f32 0.0, %v1035
        %v1037 = vpop.f32.mrf.mxu0
        %1038 = vdwg.mxu0
        %v1039 = vtanh.pop %v1026
        %v1040 = vtanh.pop %v1031
        %v1041 = vtanh.pop %v1036
        %v1042 = vadd.f32 %v1039, %v1040
        %v1043 = vadd.f32 %v1042, %v1041
        %v1044 = vrot.slane %v1043, 4
        %v1045 = vadd.f32 %v1043, %v1044
        %v1046 = vrot.slane %v1045, 2
        %v1047 = vadd.f32 %v1045, %v1046
        %v1048 = vrot.slane %v1047, 1
        %v1049 = vadd.f32 %v1047, %v1048
        %v1050 = vmul.f32 %v1049, 0.041666668
        %v1051 = vmul.f32 %v1039, %v1039
        %v1052 = vmul.f32 %v1040, %v1040
        %v1053 = vmul.f32 %v1041, %v1041
        %v1054 = vadd.f32 %v1051, %v1052
        %v1055 = vadd.f32 %v1054, %v1053
        %v1056 = vrot.slane %v1055, 4
        %v1057 = vadd.f32 %v1055, %v1056
        %v1058 = vrot.slane %v1057, 2
        %v1059 = vadd.f32 %v1057, %v1058
        %v1060 = vrot.slane %v1059, 1
        %v1061 = vadd.f32 %v1059, %v1060
        %v1062 = vmul.f32 %v1061, 0.041666668
        %v1063 = vmul.f32 %v1050, %v1050
        %v1064 = vsub.f32 %v1062, %v1063
        %v1065 = vadd.f32 %v1064, 1e-05
        %v1066 = vrsqrt.pop %v1065
        %v1067 = vmul.f32 %v485, %v1066
        %v1069 = vlaneseq
        %v1070 = vshrl.u32 %v1069, 7
        %v1071 = vsub.s32 0, %v1070
        %v1072 = vrot.slane %v1067, %v1071
        %v1074 = vmul.f32 %v1039, %v1072
        %v1075 = vmul.f32 %v1040, %v1072
        %v1076 = vmul.f32 %v1041, %v1072
        %v1077 = vmul.f32 %v1050, %v1067
        %v1078 = vsub.f32 %v486, %v1077
        %v1080 = vlaneseq
        %v1081 = vshrl.u32 %v1080, 7
        %v1082 = vsub.s32 0, %v1081
        %v1083 = vrot.slane %v1078, %v1082
        %v1085 = vadd.f32 %v1074, %v1083
        %v1086 = vadd.f32 %v1075, %v1083
        %v1087 = vadd.f32 %v1076, %v1083
        %1088 = vmatprep.subr.mxu0 0.0
        %1089 = vmatpush1.msra.mxu0 %v484
        %1090 = vmatprep.subr.mxu0 0.0
        %1091 = vmatpush1.msra.mxu0 %v483
        %1092 = vmatprep.subr.mxu0 0.0
        %1093 = vmatpush1.msra.mxu0 %v482
        %1094 = vmatprep.subr.mxu0 0.0
        %1095 = vmatpush1.msra.mxu0 %v481
        %1096 = vmatprep.subr.mxu0 0.0
        %1097 = vmatpush1.msra.mxu0 %v480
        %1098 = vmatprep.subr.mxu0 0.0
        %1099 = vmatpush1.msra.mxu0 %v479
        %1100 = vmatprep.subr.mxu0 0.0
        %1101 = vmatpush1.msra.mxu0 %v478
        %1102 = vmatprep.subr.mxu0 0.0
        %1103 = vmatpush1.msra.mxu0 %v477
        %1104 = vmatprep.subr.mxu0 0.0
        %1105 = vmatpush1.msra.mxu0 %v476
        %1106 = vmatprep.subr.mxu0 0.0
        %1107 = vmatpush1.msra.mxu0 %v475
        %1108 = vmatprep.subr.mxu0 0.0
        %1109 = vmatpush1.msra.mxu0 %v474
        %1110 = vmatprep.subr.mxu0 0.0
        %1111 = vmatpush1.msra.mxu0 %v473
        %1112 = vmatprep.subr.mxu0 0.0
        %1113 = vmatpush1.msra.mxu0 %v472
        %1114 = vmatprep.subr.mxu0 0.0
        %1115 = vmatpush1.msra.mxu0 %v471
        %1116 = vmatprep.subr.mxu0 0.0
        %1117 = vmatpush1.msra.mxu0 %v470
        %1118 = vmatprep.subr.mxu0 0.0
        %1119 = vmatpush1.msra.mxu0 %v469
        %1120 = vmatprep.subr.mxu0 0.0
        %1121 = vmatpush2.msra.mxu0 0.0
        %1122 = vmatprep.subr.mxu0 0.0
        %1123 = vmatpush2.msra.mxu0 0.0
        %1124 = vmatprep.subr.mxu0 0.0
        %1125 = vmatpush2.msra.mxu0 0.0
        %1126 = vmatprep.subr.mxu0 0.0
        %1127 = vmatpush2.msra.mxu0 0.0
        %1128 = vmatprep.subr.mxu0 0.0
        %1129 = vmatpush2.msra.mxu0 0.0
        %1130 = vmatprep.subr.mxu0 0.0
        %1131 = vmatpush2.msra.mxu0 0.0
        %1132 = vmatprep.subr.mxu0 0.0
        %1133 = vmatpush2.msra.mxu0 0.0
        %1134 = vmatprep.subr.mxu0 0.0
        %1135 = vmatpush2.msra.mxu0 0.0
        %1136 = vmatprep.subr.mxu0 0.0
        %1137 = vmatpush2.msra.mxu0 0.0
        %1138 = vmatprep.subr.mxu0 0.0
        %1139 = vmatpush2.msra.mxu0 0.0
        %1140 = vmatprep.subr.mxu0 0.0
        %1141 = vmatpush2.msra.mxu0 0.0
        %1142 = vmatprep.subr.mxu0 0.0
        %1143 = vmatpush2.msra.mxu0 0.0
        %1144 = vmatprep.subr.mxu0 0.0
        %1145 = vmatpush2.msra.mxu0 0.0
        %1146 = vmatprep.subr.mxu0 0.0
        %1147 = vmatpush2.msra.mxu0 0.0
        %1148 = vmatprep.subr.mxu0 0.0
        %1149 = vmatpush2.msra.mxu0 0.0
        %1150 = vmatprep.subr.mxu0 0.0
        %1151 = vmatpush2.msra.mxu0 0.0
        %1152 = vmatprep.mubr.f32.mxu0 0.0
        %1153 = vmatmul.mubr.f32.gmra.mxu0 %v1085
        %v1154 = vpop.f32.mrf.mxu0
        %v1155 = vadd.f32 0.0, %v1154
        %v1156 = vpop.f32.mrf.mxu0
        %1157 = vmatprep.mubr.f32.mxu0 0.0
        %1158 = vmatmul.mubr.f32.gmra.mxu0 %v1086
        %v1159 = vpop.f32.mrf.mxu0
        %v1160 = vadd.f32 0.0, %v1159
        %v1161 = vpop.f32.mrf.mxu0
        %1162 = vmatprep.mubr.f32.mxu0 0.0
        %1163 = vmatmul.mubr.f32.gmra.mxu0 %v1087
        %v1164 = vpop.f32.mrf.mxu0
        %v1165 = vadd.f32 0.0, %v1164
        %v1166 = vpop.f32.mrf.mxu0
        %1167 = vdwg.mxu0
        %s1168 = scalar_lea.vmem %s400, 24 [#allocation7]
        %v1169 = vld [vmem:[%s1168] sm:$0xff]
        %v1170 = vld [vmem:[%s1168 + $0x8] sm:$0xff]
        %v1171 = vld [vmem:[%s1168 + $0x10] sm:$0xff]
        %v1173 = vsel %vm721, %v1169, 0
        %v1176 = vsel %vm721, %v1170, 0
        %v1179 = vsel %vm721, %v1171, 0
        %1181 = vmatprep.subr.mxu0 0.0
        %1182 = vmatpush1.msra.mxu0 0.0
        %1183 = vmatprep.subr.mxu0 0.0
        %1184 = vmatpush1.msra.mxu0 0.0
        %1185 = vmatprep.subr.mxu0 0.0
        %1186 = vmatpush1.msra.mxu0 0.0
        %1187 = vmatprep.subr.mxu0 0.0
        %1188 = vmatpush1.msra.mxu0 0.0
        %1189 = vmatprep.subr.mxu0 0.0
        %1190 = vmatpush1.msra.mxu0 0.0
        %1191 = vmatprep.subr.mxu0 0.0
        %1192 = vmatpush1.msra.mxu0 0.0
        %1193 = vmatprep.subr.mxu0 0.0
        %1194 = vmatpush1.msra.mxu0 0.0
        %1195 = vmatprep.subr.mxu0 0.0
        %1196 = vmatpush1.msra.mxu0 0.0
        %1197 = vmatprep.subr.mxu0 0.0
        %1198 = vmatpush1.msra.mxu0 0.0
        %1199 = vmatprep.subr.mxu0 0.0
        %1200 = vmatpush1.msra.mxu0 0.0
        %1201 = vmatprep.subr.mxu0 0.0
        %1202 = vmatpush1.msra.mxu0 0.0
        %1203 = vmatprep.subr.mxu0 0.0
        %1204 = vmatpush1.msra.mxu0 0.0
        %1205 = vmatprep.subr.mxu0 0.0
        %1206 = vmatpush1.msra.mxu0 0.0
        %1207 = vmatprep.subr.mxu0 0.0
        %1208 = vmatpush1.msra.mxu0 %v1165
        %1209 = vmatprep.subr.mxu0 0.0
        %1210 = vmatpush1.msra.mxu0 %v1160
        %1211 = vmatprep.subr.mxu0 0.0
        %1212 = vmatpush1.msra.mxu0 %v1155
        %1213 = vmatprep.subr.mxu0 0.0
        %1214 = vmatpush2.msra.mxu0 0.0
        %1215 = vmatprep.subr.mxu0 0.0
        %1216 = vmatpush2.msra.mxu0 0.0
        %1217 = vmatprep.subr.mxu0 0.0
        %1218 = vmatpush2.msra.mxu0 0.0
        %1219 = vmatprep.subr.mxu0 0.0
        %1220 = vmatpush2.msra.mxu0 0.0
        %1221 = vmatprep.subr.mxu0 0.0
        %1222 = vmatpush2.msra.mxu0 0.0
        %1223 = vmatprep.subr.mxu0 0.0
        %1224 = vmatpush2.msra.mxu0 0.0
        %1225 = vmatprep.subr.mxu0 0.0
        %1226 = vmatpush2.msra.mxu0 0.0
        %1227 = vmatprep.subr.mxu0 0.0
        %1228 = vmatpush2.msra.mxu0 0.0
        %1229 = vmatprep.subr.mxu0 0.0
        %1230 = vmatpush2.msra.mxu0 0.0
        %1231 = vmatprep.subr.mxu0 0.0
        %1232 = vmatpush2.msra.mxu0 0.0
        %1233 = vmatprep.subr.mxu0 0.0
        %1234 = vmatpush2.msra.mxu0 0.0
        %1235 = vmatprep.subr.mxu0 0.0
        %1236 = vmatpush2.msra.mxu0 0.0
        %1237 = vmatprep.subr.mxu0 0.0
        %1238 = vmatpush2.msra.mxu0 0.0
        %1239 = vmatprep.subr.mxu0 0.0
        %1240 = vmatpush2.msra.mxu0 0.0
        %1241 = vmatprep.subr.mxu0 0.0
        %1242 = vmatpush2.msra.mxu0 0.0
        %1243 = vmatprep.subr.mxu0 0.0
        %1244 = vmatpush2.msra.mxu0 0.0
        %1245 = vmatprep.mubr.f32.mxu0 0.0
        %1246 = vmatmul.mubr.f32.gmra.mxu0 %v1173
        %v1247 = vpop.f32.mrf.mxu0
        %v1248 = vadd.f32 %v719, %v1247
        %v1249 = vpop.f32.mrf.mxu0
        %1250 = vmatprep.mubr.f32.mxu0 0.0
        %1251 = vmatmul.mubr.f32.gmra.mxu0 %v1176
        %v1252 = vpop.f32.mrf.mxu0
        %v1253 = vadd.f32 %v719, %v1252
        %v1254 = vpop.f32.mrf.mxu0
        %1255 = vmatprep.mubr.f32.mxu0 0.0
        %1256 = vmatmul.mubr.f32.gmra.mxu0 %v1179
        %v1257 = vpop.f32.mrf.mxu0
        %v1258 = vadd.f32 %v719, %v1257
        %v1259 = vpop.f32.mrf.mxu0
        %1260 = vdwg.mxu0
        %v1261 = vadd.f32 %v1248, %v1253
        %v1262 = vadd.f32 %v1261, %v1258
        %v1263 = vrot.slane %v1262, 4
        %v1264 = vadd.f32 %v1262, %v1263
        %v1265 = vrot.slane %v1264, 2
        %v1266 = vadd.f32 %v1264, %v1265
        %v1267 = vrot.slane %v1266, 1
        %v1268 = vadd.f32 %v1266, %v1267
        %v1269 = vmul.f32 %v1268, 0.041666668
        %v1270 = vmul.f32 %v1248, %v1248
        %v1271 = vmul.f32 %v1253, %v1253
        %v1272 = vmul.f32 %v1258, %v1258
        %v1273 = vadd.f32 %v1270, %v1271
        %v1274 = vadd.f32 %v1273, %v1272
        %v1275 = vrot.slane %v1274, 4
        %v1276 = vadd.f32 %v1274, %v1275
        %v1277 = vrot.slane %v1276, 2
        %v1278 = vadd.f32 %v1276, %v1277
        %v1279 = vrot.slane %v1278, 1
        %v1280 = vadd.f32 %v1278, %v1279
        %v1281 = vmul.f32 %v1280, 0.041666668
        %v1282 = vmul.f32 %v1269, %v1269
        %v1283 = vsub.f32 %v1281, %v1282
        %v1284 = vadd.f32 %v1283, 1e-05
        %v1285 = vrsqrt.pop %v1284
        %v1286 = vmul.f32 %v487, %v1285
        %v1288 = vlaneseq
        %v1289 = vshrl.u32 %v1288, 7
        %v1290 = vsub.s32 0, %v1289
        %v1291 = vrot.slane %v1286, %v1290
        %v1293 = vmul.f32 %v1248, %v1291
        %v1294 = vmul.f32 %v1253, %v1291
        %v1295 = vmul.f32 %v1258, %v1291
        %v1296 = vmul.f32 %v1269, %v1286
        %v1297 = vsub.f32 %v488, %v1296
        %v1299 = vlaneseq
        %v1300 = vshrl.u32 %v1299, 7
        %v1301 = vsub.s32 0, %v1300
        %v1302 = vrot.slane %v1297, %v1301
        %v1304 = vadd.f32 %v1293, %v1302
        %v1305 = vadd.f32 %v1294, %v1302
        %v1306 = vadd.f32 %v1295, %v1302
        %v1307 = vtanh.pop %v1304
        %v1308 = vtanh.pop %v1305
        %v1309 = vtanh.pop %v1306
        %s1310 = scalar_lea.vmem %s460, 2
        %v1311 = vld [vmem:[%s1310] sm:$0x3]
        %v1313 = vsel %vm721, %v1311, 0
        %1315 = vmatprep.subr.mxu0 0.0
        %1316 = vmatpush1.msra.mxu0 0.0
        %1317 = vmatprep.subr.mxu0 0.0
        %1318 = vmatpush1.msra.mxu0 0.0
        %1319 = vmatprep.subr.mxu0 0.0
        %1320 = vmatpush1.msra.mxu0 0.0
        %1321 = vmatprep.subr.mxu0 0.0
        %1322 = vmatpush1.msra.mxu0 0.0
        %1323 = vmatprep.subr.mxu0 0.0
        %1324 = vmatpush1.msra.mxu0 0.0
        %1325 = vmatprep.subr.mxu0 0.0
        %1326 = vmatpush1.msra.mxu0 0.0
        %1327 = vmatprep.subr.mxu0 0.0
        %1328 = vmatpush1.msra.mxu0 0.0
        %1329 = vmatprep.subr.mxu0 0.0
        %1330 = vmatpush1.msra.mxu0 0.0
        %1331 = vmatprep.subr.mxu0 0.0
        %1332 = vmatpush1.msra.mxu0 0.0
        %1333 = vmatprep.subr.mxu0 0.0
        %1334 = vmatpush1.msra.mxu0 0.0
        %1335 = vmatprep.subr.mxu0 0.0
        %1336 = vmatpush1.msra.mxu0 0.0
        %1337 = vmatprep.subr.mxu0 0.0
        %1338 = vmatpush1.msra.mxu0 0.0
        %1339 = vmatprep.subr.mxu0 0.0
        %1340 = vmatpush1.msra.mxu0 0.0
        %1341 = vmatprep.subr.mxu0 0.0
        %1342 = vmatpush1.msra.mxu0 %v1309
        %1343 = vmatprep.subr.mxu0 0.0
        %1344 = vmatpush1.msra.mxu0 %v1308
        %1345 = vmatprep.subr.mxu0 0.0
        %1346 = vmatpush1.msra.mxu0 %v1307
        %1347 = vmatprep.subr.mxu0 0.0
        %1348 = vmatpush2.msra.mxu0 0.0
        %1349 = vmatprep.subr.mxu0 0.0
        %1350 = vmatpush2.msra.mxu0 0.0
        %1351 = vmatprep.subr.mxu0 0.0
        %1352 = vmatpush2.msra.mxu0 0.0
        %1353 = vmatprep.subr.mxu0 0.0
        %1354 = vmatpush2.msra.mxu0 0.0
        %1355 = vmatprep.subr.mxu0 0.0
        %1356 = vmatpush2.msra.mxu0 0.0
        %1357 = vmatprep.subr.mxu0 0.0
        %1358 = vmatpush2.msra.mxu0 0.0
        %1359 = vmatprep.subr.mxu0 0.0
        %1360 = vmatpush2.msra.mxu0 0.0
        %1361 = vmatprep.subr.mxu0 0.0
        %1362 = vmatpush2.msra.mxu0 0.0
        %1363 = vmatprep.subr.mxu0 0.0
        %1364 = vmatpush2.msra.mxu0 0.0
        %1365 = vmatprep.subr.mxu0 0.0
        %1366 = vmatpush2.msra.mxu0 0.0
        %1367 = vmatprep.subr.mxu0 0.0
        %1368 = vmatpush2.msra.mxu0 0.0
        %1369 = vmatprep.subr.mxu0 0.0
        %1370 = vmatpush2.msra.mxu0 0.0
        %1371 = vmatprep.subr.mxu0 0.0
        %1372 = vmatpush2.msra.mxu0 0.0
        %1373 = vmatprep.subr.mxu0 0.0
        %1374 = vmatpush2.msra.mxu0 0.0
        %1375 = vmatprep.subr.mxu0 0.0
        %1376 = vmatpush2.msra.mxu0 0.0
        %1377 = vmatprep.subr.mxu0 0.0
        %1378 = vmatpush2.msra.mxu0 0.0
        %1379 = vmatprep.mubr.f32.mxu0 0.0
        %1380 = vmatmul.mubr.f32.gmra.mxu0 %v1313
        %v1381 = vpop.f32.mrf.mxu0
        %v1382 = vadd.f32 0.0, %v1381
        %v1383 = vpop.f32.mrf.mxu0
        %1384 = vdwg.mxu0
        %v1385 = vtanh.pop %v1382
        %v1386 = vsel %vm935, %v1385, 0.0
        %v1387 = vrot.slane %v1386, 4
        %v1388 = vadd.f32 %v1386, %v1387
        %v1389 = vrot.slane %v1388, 2
        %v1390 = vadd.f32 %v1388, %v1389
        %v1391 = vrot.slane %v1390, 1
        %v1392 = vadd.f32 %v1390, %v1391
        %v1393 = vmul.f32 %v1392, 0.5
        %v1394 = vsel %vm935, %v1385, %v1393
        %s1395 = scalar_lea.vmem %s466, 4
        %1396 = vst [vmem:[%s1395] sm:$0x7] %v1394
        %s1397 = smul.u32 2, %s26
        %p1398 = scmp.lt.s32.totalorder %s1397, 3
        %s1399 = scalar_select %p1398, %s1397, 3
        %s1400 = smul.addr %s1399, 4
        %s1401 = scalar_lea.vmem %s10, %s1400
        // Predicated region
        $region77: #{tpu_custom_call.1} parent=59 // pred_check
          %p1402 = pneg %p269
        $region78: #{tpu_custom_call.1} parent=59 // pred_check_branch
          %1404 = sbr.rel (%p1402) target = $region80
        $region79: #{tpu_custom_call.1} parent=59 // pred_region
          %s1405 = smul.u32 2, %s26
        $region80: #{tpu_custom_call.1} parent=59 // pred_fallthru
          _
      $region60: #{tpu_custom_call.1} parent=5 // pred_fallthru
        _
      %p1406 = scmp.le.s32.totalorder 2, %s21
      // Predicated region
      $region81: #{tpu_custom_call.1} parent=5 // pred_check
        %p1407 = pneg %p1406
      $region82: #{tpu_custom_call.1} parent=5 // pred_check_branch
        %1409 = sbr.rel (%p1407) target = $region84
      $region83: #{tpu_custom_call.1} parent=5 // pred_region
        %s1410 = ssub.s32 %s21, 2
        // Predicated region
        $region85: #{tpu_custom_call.1} parent=83 // pred_check
          %p1411 = pneg %p275
        $region86: #{tpu_custom_call.1} parent=83 // pred_check_branch
          %1413 = sbr.rel (%p1411) target = $region88
        $region87: #{tpu_custom_call.1} parent=83 // pred_region
          %s1414 = smul.u32 2, %s27
          %p1415 = scmp.lt.s32.totalorder %s1414, 3
          %s1416 = scalar_select %p1415, %s1414, 3
          %s1417 = smul.addr %s1416, 4
          %s1418 = scalar_lea.vmem %s10, %s1417
        $region88: #{tpu_custom_call.1} parent=83 // pred_fallthru
          _
      $region84: #{tpu_custom_call.1} parent=5 // pred_fallthru
        _
    $region6: #{tpu_custom_call.1} parent=1 // loop_footer
      %s25 = sadd.s32 1, %s21
    $region7: #{tpu_custom_call.1} parent=1 // loop_footer_branch
      %20 = sbr.rel target = $region3
    $region8: #{tpu_custom_call.1} parent=1 // loop_exit
      _
    %1419 = vsyncpa [#allocation3], 1
    %s1420 = scalar_lea.sflag [#allocation3], 1
    %1421 = vsyncpa %s1420, 1
    %1422 = vsyncpa [#allocation5], 1
    %1423 = vsyncpa [#allocation8], 1
    %s1424 = scalar_lea.sflag [#allocation8], 1
    %1425 = vsyncpa %s1424, 1

</llo_original>
